<compile_context>
chip_gen: v7x
topology: tpu7x:2x2x1
jax: 0.10.0
libtpu: 0.0.40
codegen_flags: <defaults>
</compile_context>

<pallas_src>
import jax
import jax.numpy as jnp
from jax.experimental import pallas as pl
from jax.experimental.pallas import tpu as pltpu


def _round_up(x, m):
    return (x + m - 1) // m * m


def _vmem_limit_bytes():
    """Per-generation VMEM limit: capacity minus ~16 MiB headroom."""
    headroom = 16 * 1024 * 1024
    try:
        cap = int(pltpu.get_tpu_info().vmem_capacity_bytes)
        return max(32 * 1024 * 1024, cap - headroom)
    except Exception:
        # Safe default: above the 16/32 MiB scoped defaults, below v7x's 64 MiB.
        return 48 * 1024 * 1024


def _resident_spec(block_shape, index_map, use_buffered):
    """BlockSpec for operands whose block index never changes across the grid.

    Buffered(1) avoids allocating a second (useless) pipeline buffer for
    constant-index blocks, halving resident-weight VMEM.
    """
    if use_buffered:
        return pl.BlockSpec(block_shape, index_map, pipeline_mode=pl.Buffered(1))
    return pl.BlockSpec(block_shape, index_map)


def _pick_batch_tile(B, block_m):
    """Batch tile size (multiple of 16 sublanes) and padded batch."""
    sub = 16
    bm_full = _round_up(B, sub)
    if bm_full <= block_m:
        if B > 8:
            # Ensure >= 2 batch tiles when batch permits so both TensorCores
            # (v7x) / megacore can be used instead of one tile swallowing B.
            bm = _round_up(-(-B // 2), sub)
        else:
            bm = bm_full
    else:
        bm = block_m
    Bp = _round_up(B, bm)
    return bm, Bp


def _pad_cast2d(a, rows, cols, dtype):
    r, c = a.shape
    if r == rows and c == cols and a.dtype == dtype:
        return a
    return jnp.zeros((rows, cols), dtype).at[:r, :c].set(a.astype(dtype))


# ----------------------------------------------------------------------------
# Kernels
# ----------------------------------------------------------------------------

def _gru_math(x, h, wx, wh, b, hp):
    """Shared gate math. x: (bm, Ip) compute dtype, h: (bm, Hp) f32."""
    cd = wx.dtype
    # Two fused wide matmuls on the MXU, f32 accumulation.
    gx = jnp.dot(x, wx, preferred_element_type=jnp.float32) + b[0:1, :]
    gh = jnp.dot(h.astype(cd), wh, preferred_element_type=jnp.float32) + b[1:2, :]
    # Lane-aligned slices (hp is a multiple of 128).
    r = jax.nn.sigmoid(gx[:, :hp] + gh[:, :hp])                 # reset gate
    z = jax.nn.sigmoid(gx[:, hp:2 * hp] + gh[:, hp:2 * hp])     # update gate
    n = jnp.tanh(gx[:, 2 * hp:] + r * gh[:, 2 * hp:])           # candidate
    return (1.0 - z) * n + z * h                                # f32 recurrence


def gru_cell_kernel(x_ref, h_ref, wx_ref, wh_ref, b_ref, out_ref):
    """One batch tile of a single GRU step."""
    hp = out_ref.shape[1]
    new_h = _gru_math(x_ref[...], h_ref[...], wx_ref[...], wh_ref[...],
                      b_ref[...], hp)
    out_ref[...] = new_h.astype(out_ref.dtype)


def gru_seq_kernel(x_ref, h0_ref, wx_ref, wh_ref, b_ref, out_ref, h_scr):
    """Fused sequence: grid = (batch_tiles, T); h carried in VMEM scratch."""
    t = pl.program_id(1)

    @pl.when(t == 0)
    def _():
        h_scr[...] = h0_ref[...]

    hp = out_ref.shape[-1]
    new_h = _gru_math(x_ref[0], h_scr[...], wx_ref[...], wh_ref[...],
                      b_ref[...], hp)
    h_scr[...] = new_h
    out_ref[0] = new_h.astype(out_ref.dtype)


# ----------------------------------------------------------------------------
# One-time weight preparation
# ----------------------------------------------------------------------------

def prepare_gru_weights(params, input_size, hidden_size,
                        compute_dtype=jnp.bfloat16):
    """Transpose, fuse, pad to 128 and cast once per model (not per call).

    params follow the PyTorch module layout:
      w_gate (2H, I+H), b_gate (2H,), w_i (H, I), b_i (H,), w_h (H, H), b_h (H,)
    """
    I, H = input_size, hidden_size
    Ip = _round_up(I, 128)
    Hp = _round_up(H, 128)

    wg = params["w_gate"]                 # (2H, I+H), PyTorch (out, in)
    wgx = wg[:, :I].T                     # (I, 2H): cols [0:H]=r, [H:2H]=z
    wgh = wg[:, I:].T                     # (H, 2H)

    wx = jnp.zeros((Ip, 3 * Hp), jnp.float32)
    wx = wx.at[:I, :H].set(wgx[:, :H])
    wx = wx.at[:I, Hp:Hp + H].set(wgx[:, H:])
    wx = wx.at[:I, 2 * Hp:2 * Hp + H].set(params["w_i"].T)

    wh = jnp.zeros((Hp, 3 * Hp), jnp.float32)
    wh = wh.at[:H, :H].set(wgh[:, :H])
    wh = wh.at[:H, Hp:Hp + H].set(wgh[:, H:])
    wh = wh.at[:H, 2 * Hp:2 * Hp + H].set(params["w_h"].T)

    b = jnp.zeros((2, 3 * Hp), jnp.float32)
    b = b.at[0, :H].set(params["b_gate"][:H])
    b = b.at[0, Hp:Hp + H].set(params["b_gate"][H:])
    b = b.at[0, 2 * Hp:2 * Hp + H].set(params["b_i"])
    b = b.at[1, 2 * Hp:2 * Hp + H].set(params["b_h"])

    return {
        "wx": wx.astype(compute_dtype),
        "wh": wh.astype(compute_dtype),
        "b": b,                           # biases stay f32
        "I": I, "H": H, "Ip": Ip, "Hp": Hp,
    }


# ----------------------------------------------------------------------------
# Wrappers
# ----------------------------------------------------------------------------

def gru_cell_forward(x, h, prepared, *, block_m=256):
    """Single GRU step.  x: (B, I), h: (B, H) or None."""
    B, I = x.shape
    assert I == prepared["I"]
    H, Ip, Hp = prepared["H"], prepared["Ip"], prepared["Hp"]
    cd = prepared["wx"].dtype

    if h is None:
        h = jnp.zeros((B, H), dtype=jnp.float32)

    bm, Bp = _pick_batch_tile(B, block_m)

    xp = _pad_cast2d(x, Bp, Ip, cd)                    # x DMA'd in compute dtype
    hp_arr = _pad_cast2d(h, Bp, Hp, jnp.float32)       # h stays f32

    def run(use_buffered):
        return pl.pallas_call(
            gru_cell_kernel,
            out_shape=jax.ShapeDtypeStruct((Bp, Hp), jnp.float32),
            grid=(Bp // bm,),
            in_specs=[
                pl.BlockSpec((bm, Ip), lambda i: (i, 0)),            # x tile
                pl.BlockSpec((bm, Hp), lambda i: (i, 0)),            # h tile
                _resident_spec((Ip, 3 * Hp), lambda i: (0, 0), use_buffered),
                _resident_spec((Hp, 3 * Hp), lambda i: (0, 0), use_buffered),
                _resident_spec((2, 3 * Hp), lambda i: (0, 0), use_buffered),
            ],
            out_specs=pl.BlockSpec((bm, Hp), lambda i: (i, 0)),
            compiler_params=pltpu.CompilerParams(
                dimension_semantics=("parallel",),
                vmem_limit_bytes=_vmem_limit_bytes(),
            ),
        )(xp, hp_arr, prepared["wx"], prepared["wh"], prepared["b"])

    try:
        out = run(True)
    except Exception:
        out = run(False)   # fallback if pipeline_mode/Buffered(1) unsupported

    if Bp == B and Hp == H:
        return out.astype(x.dtype)
    return out[:B, :H].astype(x.dtype)


def gru_sequence_forward(xs, h0, prepared, *, block_m=256):
    """Fused sequence of GRU steps (weights DMA'd once per batch tile).

    xs: (T, B, I), h0: (B, H) or None.  Returns all hidden states (T, B, H).
    """
    T, B, I = xs.shape
    assert I == prepared["I"]
    H, Ip, Hp = prepared["H"], prepared["Ip"], prepared["Hp"]
    cd = prepared["wx"].dtype

    if h0 is None:
        h0 = jnp.zeros((B, H), dtype=jnp.float32)

    bm, Bp = _pick_batch_tile(B, block_m)

    if B == Bp and I == Ip and xs.dtype == cd:
        xs_p = xs
    else:
        xs_p = jnp.zeros((T, Bp, Ip), cd).at[:, :B, :I].set(xs.astype(cd))
    h0_p = _pad_cast2d(h0, Bp, Hp, jnp.float32)

    def run(use_buffered):
        return pl.pallas_call(
            gru_seq_kernel,
            out_shape=jax.ShapeDtypeStruct((T, Bp, Hp), jnp.float32),
            grid=(Bp // bm, T),
            in_specs=[
                pl.BlockSpec((1, bm, Ip), lambda i, t: (t, i, 0)),   # x_t tile
                pl.BlockSpec((bm, Hp), lambda i, t: (i, 0)),         # h0 tile
                _resident_spec((Ip, 3 * Hp), lambda i, t: (0, 0), use_buffered),
                _resident_spec((Hp, 3 * Hp), lambda i, t: (0, 0), use_buffered),
                _resident_spec((2, 3 * Hp), lambda i, t: (0, 0), use_buffered),
            ],
            out_specs=pl.BlockSpec((1, bm, Hp), lambda i, t: (t, i, 0)),
            scratch_shapes=[pltpu.VMEM((bm, Hp), jnp.float32)],      # carried h
            compiler_params=pltpu.CompilerParams(
                dimension_semantics=("parallel", "arbitrary"),
                vmem_limit_bytes=_vmem_limit_bytes(),
            ),
        )(xs_p, h0_p, prepared["wx"], prepared["wh"], prepared["b"])

    try:
        out = run(True)
    except Exception:
        out = run(False)

    if Bp == B and Hp == H:
        return out.astype(xs.dtype)
    return out[:, :B, :H].astype(xs.dtype)


# ----------------------------------------------------------------------------
# Init + pure-JAX reference
# ----------------------------------------------------------------------------

def init_params(key, input_size, hidden_size):
    """Deterministic init mimicking nn.Linear's uniform(-1/sqrt(fan_in), ...)."""
    ks = jax.random.split(key, 6)

    def lin(kw, kb, fan_in, fan_out):
        bound = 1.0 / jnp.sqrt(fan_in)
        w = jax.random.uniform(kw, (fan_out, fan_in), jnp.float32, -bound, bound)
        b = jax.random.uniform(kb, (fan_out,), jnp.float32, -bound, bound)
        return w, b

    w_gate, b_gate = lin(ks[0], ks[1], input_size + hidden_size, 2 * hidden_size)
    w_i, b_i = lin(ks[2], ks[3], input_size, hidden_size)
    w_h, b_h = lin(ks[4], ks[5], hidden_size, hidden_size)
    return {"w_gate": w_gate, "b_gate": b_gate,
            "w_i": w_i, "b_i": b_i, "w_h": w_h, "b_h": b_h}


def gru_cell_reference(x, h, params):
    """Pure-JAX f32 reference matching the PyTorch forward (eval-mode dropout)."""
    B, _ = x.shape
    H = params["w_h"].shape[0]
    if h is None:
        h = jnp.zeros((B, H), dtype=x.dtype)
    combined = jnp.concatenate([x, h], axis=1)
    gates = combined @ params["w_gate"].T + params["b_gate"]
    r_gate = jax.nn.sigmoid(gates[:, :H])
    z_gate = jax.nn.sigmoid(gates[:, H:])
    i_gate = x @ params["w_i"].T + params["b_i"]
    h_gate = h @ params["w_h"].T + params["b_h"]
    n_gate = jnp.tanh(i_gate + r_gate * h_gate)
    return (1.0 - z_gate) * n_gate + z_gate * h


# ----------------------------------------------------------------------------
# Demo / validation
# ----------------------------------------------------------------------------

if __name__ == "__main__":
    B, I, H, T = 8, 16, 32, 6
    key = jax.random.PRNGKey(0)
    kp, kx, kh, ks = jax.random.split(key, 4)
    params = init_params(kp, I, H)
    x = jax.random.normal(kx, (B, I), dtype=jnp.float32)
    h0 = jax.random.normal(kh, (B, H), dtype=jnp.float32)
    xs = jax.random.normal(ks, (T, B, I), dtype=jnp.float32)

    # References (single step, h=None step, and a T-step loop).
    ref = gru_cell_reference(x, h0, params)
    ref_none = gru_cell_reference(x, None, params)
    hs_ref, h_cur = [], h0
    for t in range(T):
        h_cur = gru_cell_reference(xs[t], h_cur, params)
        hs_ref.append(h_cur)
    hs_ref = jnp.stack(hs_ref)

    # --- f32 compute path: tight correctness check ---
    prep_f32 = prepare_gru_weights(params, I, H, compute_dtype=jnp.float32)
    out_f32 = jax.block_until_ready(gru_cell_forward(x, h0, prep_f32))
    assert jnp.allclose(out_f32, ref, atol=1e-4, rtol=1e-4), "f32 cell mismatch"

    out_f32_none = jax.block_until_ready(gru_cell_forward(x, None, prep_f32))
    assert jnp.allclose(out_f32_none, ref_none, atol=1e-4, rtol=1e-4), \
        "f32 cell mismatch (h=None)"

    seq_f32 = jax.block_until_ready(gru_sequence_forward(xs, h0, prep_f32))
    assert jnp.allclose(seq_f32, hs_ref, atol=1e-4, rtol=1e-4), "f32 seq mismatch"

    # --- bf16 weight/activation path (production config): loose tolerance ---
    prep_bf16 = prepare_gru_weights(params, I, H, compute_dtype=jnp.bfloat16)
    out_bf16 = jax.block_until_ready(gru_cell_forward(x, h0, prep_bf16))
    assert jnp.allclose(out_bf16, ref, atol=5e-2, rtol=5e-2), "bf16 cell mismatch"

    seq_bf16 = jax.block_until_ready(gru_sequence_forward(xs, h0, prep_bf16))
    assert jnp.allclose(seq_bf16, hs_ref, atol=1e-1, rtol=1e-1), "bf16 seq mismatch"

    print("KERNEL_OK")
</pallas_src>

<mosaic_0001>
module attributes {stable_mosaic.version = 11 : i64} {
  func.func @gru_cell_kernel(%arg0: i32, %arg1: memref<16x128xf32, #tpu.memory_space<vmem>>, %arg2: memref<16x128xf32, #tpu.memory_space<vmem>>, %arg3: memref<128x384xf32, #tpu.memory_space<vmem>>, %arg4: memref<128x384xf32, #tpu.memory_space<vmem>>, %arg5: memref<2x384xf32, #tpu.memory_space<vmem>>, %arg6: memref<16x128xf32, #tpu.memory_space<vmem>>) attributes {dimension_semantics = [#tpu.dimension_semantics<parallel>], iteration_bounds = array<i64: 1>, scalar_prefetch = 0 : i64, scratch_operands = 0 : i64, tpu.core_type = #tpu.core_type<tc>, window_params = [{transform_indices = @transform_0, window_bounds = array<i64: 16, 128>}, {transform_indices = @transform_1, window_bounds = array<i64: 16, 128>}, {pipeline_mode = #tpu.pipeline_mode<synchronous>, transform_indices = @transform_2, window_bounds = array<i64: 128, 384>}, {pipeline_mode = #tpu.pipeline_mode<synchronous>, transform_indices = @transform_3, window_bounds = array<i64: 128, 384>}, {pipeline_mode = #tpu.pipeline_mode<synchronous>, transform_indices = @transform_4, window_bounds = array<i64: 2, 384>}, {transform_indices = @transform_5, window_bounds = array<i64: 16, 128>}]} {
    %c0 = arith.constant 0 : index
    %c0_0 = arith.constant 0 : index
    %0 = vector.load %arg1[%c0, %c0_0] : memref<16x128xf32, #tpu.memory_space<vmem>>, vector<16x128xf32>
    %c0_1 = arith.constant 0 : index
    %c0_2 = arith.constant 0 : index
    %1 = vector.load %arg2[%c0_1, %c0_2] : memref<16x128xf32, #tpu.memory_space<vmem>>, vector<16x128xf32>
    %c0_3 = arith.constant 0 : index
    %c0_4 = arith.constant 0 : index
    %2 = vector.load %arg3[%c0_3, %c0_4] : memref<128x384xf32, #tpu.memory_space<vmem>>, vector<128x384xf32>
    %c0_5 = arith.constant 0 : index
    %c0_6 = arith.constant 0 : index
    %3 = vector.load %arg4[%c0_5, %c0_6] : memref<128x384xf32, #tpu.memory_space<vmem>>, vector<128x384xf32>
    %c0_7 = arith.constant 0 : index
    %c0_8 = arith.constant 0 : index
    %4 = vector.load %arg5[%c0_7, %c0_8] : memref<2x384xf32, #tpu.memory_space<vmem>>, vector<2x384xf32>
    %cst = arith.constant dense<0.000000e+00> : vector<16x384xf32>
    %5 = tpu.matmul %0, %2, %cst {dimension_numbers = #tpu.dot_dimension_numbers<[1], [0], [0], [1], [0, 0, 1, 1], [], []>} : vector<16x128xf32>, vector<128x384xf32>, vector<16x384xf32> -> vector<16x384xf32>
    %6 = vector.extract_strided_slice %4 {offsets = [0, 0], sizes = [1, 384], strides = [1, 1]} : vector<2x384xf32> to vector<1x384xf32>
    %7 = vector.broadcast %6 : vector<1x384xf32> to vector<16x384xf32>
    %8 = arith.addf %5, %7 : vector<16x384xf32>
    %cst_9 = arith.constant dense<0.000000e+00> : vector<16x384xf32>
    %9 = tpu.matmul %1, %3, %cst_9 {dimension_numbers = #tpu.dot_dimension_numbers<[1], [0], [0], [1], [0, 0, 1, 1], [], []>} : vector<16x128xf32>, vector<128x384xf32>, vector<16x384xf32> -> vector<16x384xf32>
    %10 = vector.extract_strided_slice %4 {offsets = [1, 0], sizes = [1, 384], strides = [1, 1]} : vector<2x384xf32> to vector<1x384xf32>
    %11 = vector.broadcast %10 : vector<1x384xf32> to vector<16x384xf32>
    %12 = arith.addf %9, %11 : vector<16x384xf32>
    %13 = vector.extract_strided_slice %8 {offsets = [0, 0], sizes = [16, 128], strides = [1, 1]} : vector<16x384xf32> to vector<16x128xf32>
    %14 = vector.extract_strided_slice %12 {offsets = [0, 0], sizes = [16, 128], strides = [1, 1]} : vector<16x384xf32> to vector<16x128xf32>
    %15 = arith.addf %13, %14 : vector<16x128xf32>
    %16 = arith.negf %15 : vector<16x128xf32>
    %17 = math.exp %16 : vector<16x128xf32>
    %cst_10 = arith.constant 1.000000e+00 : f32
    %18 = vector.broadcast %cst_10 : f32 to vector<16x128xf32>
    %19 = arith.addf %18, %17 : vector<16x128xf32>
    %20 = arith.divf %18, %19 : vector<16x128xf32>
    %21 = vector.extract_strided_slice %8 {offsets = [0, 128], sizes = [16, 128], strides = [1, 1]} : vector<16x384xf32> to vector<16x128xf32>
    %22 = vector.extract_strided_slice %12 {offsets = [0, 128], sizes = [16, 128], strides = [1, 1]} : vector<16x384xf32> to vector<16x128xf32>
    %23 = arith.addf %21, %22 : vector<16x128xf32>
    %24 = arith.negf %23 : vector<16x128xf32>
    %25 = math.exp %24 : vector<16x128xf32>
    %cst_11 = arith.constant 1.000000e+00 : f32
    %26 = vector.broadcast %cst_11 : f32 to vector<16x128xf32>
    %27 = arith.addf %26, %25 : vector<16x128xf32>
    %28 = arith.divf %26, %27 : vector<16x128xf32>
    %29 = vector.extract_strided_slice %8 {offsets = [0, 256], sizes = [16, 128], strides = [1, 1]} : vector<16x384xf32> to vector<16x128xf32>
    %30 = vector.extract_strided_slice %12 {offsets = [0, 256], sizes = [16, 128], strides = [1, 1]} : vector<16x384xf32> to vector<16x128xf32>
    %31 = arith.mulf %20, %30 : vector<16x128xf32>
    %32 = arith.addf %29, %31 : vector<16x128xf32>
    %33 = math.tanh %32 : vector<16x128xf32>
    %cst_12 = arith.constant 1.000000e+00 : f32
    %34 = vector.broadcast %cst_12 : f32 to vector<16x128xf32>
    %35 = arith.subf %34, %28 : vector<16x128xf32>
    %36 = arith.mulf %35, %33 : vector<16x128xf32>
    %37 = arith.mulf %28, %1 : vector<16x128xf32>
    %38 = arith.addf %36, %37 : vector<16x128xf32>
    %c0_13 = arith.constant 0 : index
    %c0_14 = arith.constant 0 : index
    %39 = vector.load %arg6[%c0_13, %c0_14] : memref<16x128xf32, #tpu.memory_space<vmem>>, vector<16x128xf32>
    tpu.vector_store %arg6[%c0_13, %c0_14], %38 {strides = array<i32>} : memref<16x128xf32, #tpu.memory_space<vmem>>, vector<16x128xf32>,
    return
  }
  func.func @transform_0(%arg0: i32) -> (i32, i32) {
    %c0_i32 = arith.constant 0 : i32
    %c0_i32_0 = arith.constant 0 : i32
    return %arg0, %c0_i32 : i32, i32
  }
  func.func @transform_1(%arg0: i32) -> (i32, i32) {
    %c0_i32 = arith.constant 0 : i32
    %c0_i32_0 = arith.constant 0 : i32
    return %arg0, %c0_i32 : i32, i32
  }
  func.func @transform_2(%arg0: i32) -> (i32, i32) {
    %c0_i32 = arith.constant 0 : i32
    %c0_i32_0 = arith.constant 0 : i32
    %c0_i32_1 = arith.constant 0 : i32
    return %c0_i32, %c0_i32_0 : i32, i32
  }
  func.func @transform_3(%arg0: i32) -> (i32, i32) {
    %c0_i32 = arith.constant 0 : i32
    %c0_i32_0 = arith.constant 0 : i32
    %c0_i32_1 = arith.constant 0 : i32
    return %c0_i32, %c0_i32_0 : i32, i32
  }
  func.func @transform_4(%arg0: i32) -> (i32, i32) {
    %c0_i32 = arith.constant 0 : i32
    %c0_i32_0 = arith.constant 0 : i32
    %c0_i32_1 = arith.constant 0 : i32
    return %c0_i32, %c0_i32_0 : i32, i32
  }
  func.func @transform_5(%arg0: i32) -> (i32, i32) {
    %c0_i32 = arith.constant 0 : i32
    %c0_i32_0 = arith.constant 0 : i32
    return %arg0, %c0_i32 : i32, i32
  }
}

module attributes {stable_mosaic.version = 11 : i64} {
  func.func @gru_cell_kernel(%arg0: i32, %arg1: memref<16x128xf32, #tpu.memory_space<vmem>>, %arg2: memref<16x128xf32, #tpu.memory_space<vmem>>, %arg3: memref<128x384xf32, #tpu.memory_space<vmem>>, %arg4: memref<128x384xf32, #tpu.memory_space<vmem>>, %arg5: memref<2x384xf32, #tpu.memory_space<vmem>>, %arg6: memref<16x128xf32, #tpu.memory_space<vmem>>) attributes {dimension_semantics = [#tpu.dimension_semantics<parallel>], iteration_bounds = array<i64: 1>, scalar_prefetch = 0 : i64, scratch_operands = 0 : i64, tpu.core_type = #tpu.core_type<tc>, window_params = [{transform_indices = @transform_0, window_bounds = array<i64: 16, 128>}, {transform_indices = @transform_1, window_bounds = array<i64: 16, 128>}, {pipeline_mode = #tpu.pipeline_mode<synchronous>, transform_indices = @transform_2, window_bounds = array<i64: 128, 384>}, {pipeline_mode = #tpu.pipeline_mode<synchronous>, transform_indices = @transform_3, window_bounds = array<i64: 128, 384>}, {pipeline_mode = #tpu.pipeline_mode<synchronous>, transform_indices = @transform_4, window_bounds = array<i64: 2, 384>}, {transform_indices = @transform_5, window_bounds = array<i64: 16, 128>}]} {
    %c0 = arith.constant 0 : index
    %c0_0 = arith.constant 0 : index
    %0 = vector.load %arg1[%c0, %c0_0] : memref<16x128xf32, #tpu.memory_space<vmem>>, vector<16x128xf32>
    %c0_1 = arith.constant 0 : index
    %c0_2 = arith.constant 0 : index
    %1 = vector.load %arg2[%c0_1, %c0_2] : memref<16x128xf32, #tpu.memory_space<vmem>>, vector<16x128xf32>
    %c0_3 = arith.constant 0 : index
    %c0_4 = arith.constant 0 : index
    %2 = vector.load %arg3[%c0_3, %c0_4] : memref<128x384xf32, #tpu.memory_space<vmem>>, vector<128x384xf32>
    %c0_5 = arith.constant 0 : index
    %c0_6 = arith.constant 0 : index
    %3 = vector.load %arg4[%c0_5, %c0_6] : memref<128x384xf32, #tpu.memory_space<vmem>>, vector<128x384xf32>
    %c0_7 = arith.constant 0 : index
    %c0_8 = arith.constant 0 : index
    %4 = vector.load %arg5[%c0_7, %c0_8] : memref<2x384xf32, #tpu.memory_space<vmem>>, vector<2x384xf32>
    %cst = arith.constant dense<0.000000e+00> : vector<16x384xf32>
    %5 = tpu.matmul %0, %2, %cst {dimension_numbers = #tpu.dot_dimension_numbers<[1], [0], [0], [1], [0, 0, 1, 1], [], []>} : vector<16x128xf32>, vector<128x384xf32>, vector<16x384xf32> -> vector<16x384xf32>
    %6 = vector.extract_strided_slice %4 {offsets = [0, 0], sizes = [1, 384], strides = [1, 1]} : vector<2x384xf32> to vector<1x384xf32>
    %7 = vector.broadcast %6 : vector<1x384xf32> to vector<16x384xf32>
    %8 = arith.addf %5, %7 : vector<16x384xf32>
    %cst_9 = arith.constant dense<0.000000e+00> : vector<16x384xf32>
    %9 = tpu.matmul %1, %3, %cst_9 {dimension_numbers = #tpu.dot_dimension_numbers<[1], [0], [0], [1], [0, 0, 1, 1], [], []>} : vector<16x128xf32>, vector<128x384xf32>, vector<16x384xf32> -> vector<16x384xf32>
    %10 = vector.extract_strided_slice %4 {offsets = [1, 0], sizes = [1, 384], strides = [1, 1]} : vector<2x384xf32> to vector<1x384xf32>
    %11 = vector.broadcast %10 : vector<1x384xf32> to vector<16x384xf32>
    %12 = arith.addf %9, %11 : vector<16x384xf32>
    %13 = vector.extract_strided_slice %8 {offsets = [0, 0], sizes = [16, 128], strides = [1, 1]} : vector<16x384xf32> to vector<16x128xf32>
    %14 = vector.extract_strided_slice %12 {offsets = [0, 0], sizes = [16, 128], strides = [1, 1]} : vector<16x384xf32> to vector<16x128xf32>
    %15 = arith.addf %13, %14 : vector<16x128xf32>
    %16 = arith.negf %15 : vector<16x128xf32>
    %17 = math.exp %16 : vector<16x128xf32>
    %cst_10 = arith.constant 1.000000e+00 : f32
    %18 = vector.broadcast %cst_10 : f32 to vector<16x128xf32>
    %19 = arith.addf %18, %17 : vector<16x128xf32>
    %20 = arith.divf %18, %19 : vector<16x128xf32>
    %21 = vector.extract_strided_slice %8 {offsets = [0, 128], sizes = [16, 128], strides = [1, 1]} : vector<16x384xf32> to vector<16x128xf32>
    %22 = vector.extract_strided_slice %12 {offsets = [0, 128], sizes = [16, 128], strides = [1, 1]} : vector<16x384xf32> to vector<16x128xf32>
    %23 = arith.addf %21, %22 : vector<16x128xf32>
    %24 = arith.negf %23 : vector<16x128xf32>
    %25 = math.exp %24 : vector<16x128xf32>
    %cst_11 = arith.constant 1.000000e+00 : f32
    %26 = vector.broadcast %cst_11 : f32 to vector<16x128xf32>
    %27 = arith.addf %26, %25 : vector<16x128xf32>
    %28 = arith.divf %26, %27 : vector<16x128xf32>
    %29 = vector.extract_strided_slice %8 {offsets = [0, 256], sizes = [16, 128], strides = [1, 1]} : vector<16x384xf32> to vector<16x128xf32>
    %30 = vector.extract_strided_slice %12 {offsets = [0, 256], sizes = [16, 128], strides = [1, 1]} : vector<16x384xf32> to vector<16x128xf32>
    %31 = arith.mulf %20, %30 : vector<16x128xf32>
    %32 = arith.addf %29, %31 : vector<16x128xf32>
    %33 = math.tanh %32 : vector<16x128xf32>
    %cst_12 = arith.constant 1.000000e+00 : f32
    %34 = vector.broadcast %cst_12 : f32 to vector<16x128xf32>
    %35 = arith.subf %34, %28 : vector<16x128xf32>
    %36 = arith.mulf %35, %33 : vector<16x128xf32>
    %37 = arith.mulf %28, %1 : vector<16x128xf32>
    %38 = arith.addf %36, %37 : vector<16x128xf32>
    %c0_13 = arith.constant 0 : index
    %c0_14 = arith.constant 0 : index
    %39 = vector.load %arg6[%c0_13, %c0_14] : memref<16x128xf32, #tpu.memory_space<vmem>>, vector<16x128xf32>
    tpu.vector_store %arg6[%c0_13, %c0_14], %38 {strides = array<i32>} : memref<16x128xf32, #tpu.memory_space<vmem>>, vector<16x128xf32>,
    return
  }
  func.func @transform_0(%arg0: i32) -> (i32, i32) {
    %c0_i32 = arith.constant 0 : i32
    %c0_i32_0 = arith.constant 0 : i32
    return %arg0, %c0_i32 : i32, i32
  }
  func.func @transform_1(%arg0: i32) -> (i32, i32) {
    %c0_i32 = arith.constant 0 : i32
    %c0_i32_0 = arith.constant 0 : i32
    return %arg0, %c0_i32 : i32, i32
  }
  func.func @transform_2(%arg0: i32) -> (i32, i32) {
    %c0_i32 = arith.constant 0 : i32
    %c0_i32_0 = arith.constant 0 : i32
    %c0_i32_1 = arith.constant 0 : i32
    return %c0_i32, %c0_i32_0 : i32, i32
  }
  func.func @transform_3(%arg0: i32) -> (i32, i32) {
    %c0_i32 = arith.constant 0 : i32
    %c0_i32_0 = arith.constant 0 : i32
    %c0_i32_1 = arith.constant 0 : i32
    return %c0_i32, %c0_i32_0 : i32, i32
  }
  func.func @transform_4(%arg0: i32) -> (i32, i32) {
    %c0_i32 = arith.constant 0 : i32
    %c0_i32_0 = arith.constant 0 : i32
    %c0_i32_1 = arith.constant 0 : i32
    return %c0_i32, %c0_i32_0 : i32, i32
  }
  func.func @transform_5(%arg0: i32) -> (i32, i32) {
    %c0_i32 = arith.constant 0 : i32
    %c0_i32_0 = arith.constant 0 : i32
    return %arg0, %c0_i32 : i32, i32
  }
}

</mosaic_0001>

<llo_original>
// kernel: tpu_custom_call.1
$region0: #{tpu_custom_call.1}
  #allocation0 [shape = 'u32[]', space=smem, size = 0x4, offset = 0x4, fixed_abs, tag = 'smem constant byte address 0x4 - core index']
  #allocation1 [shape = 'u32[144,128]{1,0:T(1,128)}', space=vmem, size = 0x12000, scoped, tag = 'internal scratch']
  %s0 = inlined_call_operand.hbm [shape: f32[16,128], index: 0, kind: input, shape index: {}]
  %s1 = inlined_call_operand.hbm [shape: f32[16,128], index: 1, kind: input, shape index: {}]
  %s2 = inlined_call_operand.hbm [shape: f32[128,384], index: 2, kind: input, shape index: {}]
  %s3 = inlined_call_operand.hbm [shape: f32[128,384], index: 3, kind: input, shape index: {}]
  %s4 = inlined_call_operand.vmem [shape: f32[2,384], index: 4, kind: input, shape index: {}]
  %s5 = inlined_call_operand.hbm [shape: f32[16,128], index: 5, kind: output, shape index: {}]
  %s6 = sld [smem:[#allocation0]]
  $region46: #{tpu_custom_call.1} parent=0
    _
  %s8 = ssub.s32 1, %s6
  %s9 = scalar_select 0, %s8, %s6
  $region1: #{tpu_custom_call.1} parent=0
    #allocation2 [shape = 'u8[8192]{0}', space=vmem, size = 0x2000, scoped, tag = 'input window, operand 0, single buffered']
    #allocation3 [shape = 's32[1]{0}', space=sflag, size = 0x4, scoped, tag = 'scoped memory for tpu_custom_call.1']
    #allocation4 [shape = 's32[1]{0}', space=sflag, size = 0x4, scoped, tag = 'scoped memory for tpu_custom_call.1']
    #allocation5 [shape = 'u8[8192]{0}', space=vmem, size = 0x2000, scoped, tag = 'input window, operand 1, single buffered']
    #allocation6 [shape = 's32[1]{0}', space=sflag, size = 0x4, scoped, tag = 'scoped memory for tpu_custom_call.1']
    #allocation7 [shape = 'u8[196608]{0}', space=vmem, size = 0x30000, scoped, tag = 'input window, operand 2, single buffered']
    #allocation8 [shape = 'u8[196608]{0}', space=vmem, size = 0x30000, scoped, tag = 'input window, operand 3, single buffered']
    #allocation9 [shape = 's32[1]{0}', space=sflag, size = 0x4, scoped, tag = 'scoped memory for tpu_custom_call.1']
    #allocation10 [shape = 'u8[8192]{0}', space=vmem, size = 0x2000, scoped, tag = 'output window, operand 0, single buffered']
    %10 = vsyncpa [#allocation3], 0
    %11 = vsyncpa [#allocation6], 0
    %12 = vsyncpa [#allocation9], 0
    %13 = vsyncpa [#allocation4], 0
    // Predicated region
    $region2: #{tpu_custom_call.1} parent=1 // pred_check
      _
    $region3: #{tpu_custom_call.1} parent=1 // pred_check_branch
      %15 = sbr.rel (0) target = $region5
    $region4: #{tpu_custom_call.1} parent=1 // pred_region
      %s17 = ssub.s32 256, 256
      %18 = vsyncadd [#allocation3], %s17
      %s19 = sshll.u32 [#allocation2], 4
      %s20 = int_to_ptr.vmem [resolvable:$true] %s19
      %25 = dma.hbm_to_vmem [thread:$0]  %s0, 256, %s20, [#allocation3], 128, 128, 8
    $region5: #{tpu_custom_call.1} parent=1 // pred_fallthru
      _
    // Predicated region
    $region6: #{tpu_custom_call.1} parent=1 // pred_check
      _
    $region7: #{tpu_custom_call.1} parent=1 // pred_check_branch
      %27 = sbr.rel (0) target = $region9
    $region8: #{tpu_custom_call.1} parent=1 // pred_region
      %s29 = ssub.s32 256, 256
      %30 = vsyncadd [#allocation6], %s29
      %s31 = sshll.u32 [#allocation5], 4
      %s32 = int_to_ptr.vmem [resolvable:$true] %s31
      %37 = dma.hbm_to_vmem [thread:$0]  %s1, 256, %s32, [#allocation6], 128, 128, 8
    $region9: #{tpu_custom_call.1} parent=1 // pred_fallthru
      _
    // Predicated region
    $region10: #{tpu_custom_call.1} parent=1 // pred_check
      _
    $region11: #{tpu_custom_call.1} parent=1 // pred_check_branch
      %39 = sbr.rel (0) target = $region13
    $region12: #{tpu_custom_call.1} parent=1 // pred_region
      %s41 = ssub.s32 6144, 6144
      %42 = vsyncadd [#allocation6], %s41
      %s43 = sshll.u32 [#allocation7], 4
      %s44 = int_to_ptr.vmem [resolvable:$true] %s43
      %49 = dma.hbm_to_vmem [thread:$0]  %s2, 6144, %s44, [#allocation6], 384, 384, 24
    $region13: #{tpu_custom_call.1} parent=1 // pred_fallthru
      _
    // Predicated region
    $region14: #{tpu_custom_call.1} parent=1 // pred_check
      _
    $region15: #{tpu_custom_call.1} parent=1 // pred_check_branch
      %51 = sbr.rel (0) target = $region17
    $region16: #{tpu_custom_call.1} parent=1 // pred_region
      %s53 = ssub.s32 6144, 6144
      %54 = vsyncadd [#allocation9], %s53
      %s55 = sshll.u32 [#allocation8], 4
      %s56 = int_to_ptr.vmem [resolvable:$true] %s55
      %61 = dma.hbm_to_vmem [thread:$0]  %s3, 6144, %s56, [#allocation9], 384, 384, 24
    $region17: #{tpu_custom_call.1} parent=1 // pred_fallthru
      _
    // Predicated region
    $region18: #{tpu_custom_call.1} parent=1 // pred_check
      _
    $region19: #{tpu_custom_call.1} parent=1 // pred_check_branch
      %63 = sbr.rel (0) target = $region21
    $region20: #{tpu_custom_call.1} parent=1 // pred_region
      _
    $region21: #{tpu_custom_call.1} parent=1 // pred_fallthru
      _
    // Predicated region
    $region22: #{tpu_custom_call.1} parent=1 // pred_check
      _
    $region23: #{tpu_custom_call.1} parent=1 // pred_check_branch
      %65 = sbr.rel (0) target = $region25
    $region24: #{tpu_custom_call.1} parent=1 // pred_region
      %66 = dma.done [#allocation3], 256
    $region25: #{tpu_custom_call.1} parent=1 // pred_fallthru
      _
    // Predicated region
    $region26: #{tpu_custom_call.1} parent=1 // pred_check
      _
    $region27: #{tpu_custom_call.1} parent=1 // pred_check_branch
      %68 = sbr.rel (0) target = $region29
    $region28: #{tpu_custom_call.1} parent=1 // pred_region
      %69 = dma.done [#allocation6], 256
    $region29: #{tpu_custom_call.1} parent=1 // pred_fallthru
      _
    // Predicated region
    $region30: #{tpu_custom_call.1} parent=1 // pred_check
      _
    $region31: #{tpu_custom_call.1} parent=1 // pred_check_branch
      %71 = sbr.rel (0) target = $region33
    $region32: #{tpu_custom_call.1} parent=1 // pred_region
      %72 = dma.done [#allocation6], 6144
    $region33: #{tpu_custom_call.1} parent=1 // pred_fallthru
      _
    // Predicated region
    $region34: #{tpu_custom_call.1} parent=1 // pred_check
      _
    $region35: #{tpu_custom_call.1} parent=1 // pred_check_branch
      %74 = sbr.rel (0) target = $region37
    $region36: #{tpu_custom_call.1} parent=1 // pred_region
      %75 = dma.done [#allocation9], 6144
    $region37: #{tpu_custom_call.1} parent=1 // pred_fallthru
      _
    %v76 = vld [vmem:[#allocation2] sm:$0xff]
    %v77 = vld [vmem:[#allocation2 + $0x8] sm:$0xff]
    %v78 = vld [vmem:[#allocation5] sm:$0xff]
    %v79 = vld [vmem:[#allocation5 + $0x8] sm:$0xff]
    %v80 = vld [vmem:[#allocation7] sm:$0xff]
    %v81 = vld [vmem:[#allocation7 + $0x8] sm:$0xff]
    %v82 = vld [vmem:[#allocation7 + $0x10] sm:$0xff]
    %v83 = vld [vmem:[#allocation7 + $0x18] sm:$0xff]
    %v84 = vld [vmem:[#allocation7 + $0x20] sm:$0xff]
    %v85 = vld [vmem:[#allocation7 + $0x28] sm:$0xff]
    %v86 = vld [vmem:[#allocation7 + $0x30] sm:$0xff]
    %v87 = vld [vmem:[#allocation7 + $0x38] sm:$0xff]
    %v88 = vld [vmem:[#allocation7 + $0x40] sm:$0xff]
    %v89 = vld [vmem:[#allocation7 + $0x48] sm:$0xff]
    %v90 = vld [vmem:[#allocation7 + $0x50] sm:$0xff]
    %v91 = vld [vmem:[#allocation7 + $0x58] sm:$0xff]
    %v92 = vld [vmem:[#allocation7 + $0x60] sm:$0xff]
    %v93 = vld [vmem:[#allocation7 + $0x68] sm:$0xff]
    %v94 = vld [vmem:[#allocation7 + $0x70] sm:$0xff]
    %v95 = vld [vmem:[#allocation7 + $0x78] sm:$0xff]
    %v96 = vld [vmem:[#allocation7 + $0x80] sm:$0xff]
    %v97 = vld [vmem:[#allocation7 + $0x88] sm:$0xff]
    %v98 = vld [vmem:[#allocation7 + $0x90] sm:$0xff]
    %v99 = vld [vmem:[#allocation7 + $0x98] sm:$0xff]
    %v100 = vld [vmem:[#allocation7 + $0xa0] sm:$0xff]
    %v101 = vld [vmem:[#allocation7 + $0xa8] sm:$0xff]
    %v102 = vld [vmem:[#allocation7 + $0xb0] sm:$0xff]
    %v103 = vld [vmem:[#allocation7 + $0xb8] sm:$0xff]
    %v104 = vld [vmem:[#allocation7 + $0xc0] sm:$0xff]
    %v105 = vld [vmem:[#allocation7 + $0xc8] sm:$0xff]
    %v106 = vld [vmem:[#allocation7 + $0xd0] sm:$0xff]
    %v107 = vld [vmem:[#allocation7 + $0xd8] sm:$0xff]
    %v108 = vld [vmem:[#allocation7 + $0xe0] sm:$0xff]
    %v109 = vld [vmem:[#allocation7 + $0xe8] sm:$0xff]
    %v110 = vld [vmem:[#allocation7 + $0xf0] sm:$0xff]
    %v111 = vld [vmem:[#allocation7 + $0xf8] sm:$0xff]
    %v112 = vld [vmem:[#allocation7 + $0x100] sm:$0xff]
    %v113 = vld [vmem:[#allocation7 + $0x108] sm:$0xff]
    %v114 = vld [vmem:[#allocation7 + $0x110] sm:$0xff]
    %v115 = vld [vmem:[#allocation7 + $0x118] sm:$0xff]
    %v116 = vld [vmem:[#allocation7 + $0x120] sm:$0xff]
    %v117 = vld [vmem:[#allocation7 + $0x128] sm:$0xff]
    %v118 = vld [vmem:[#allocation7 + $0x130] sm:$0xff]
    %v119 = vld [vmem:[#allocation7 + $0x138] sm:$0xff]
    %v120 = vld [vmem:[#allocation7 + $0x140] sm:$0xff]
    %v121 = vld [vmem:[#allocation7 + $0x148] sm:$0xff]
    %v122 = vld [vmem:[#allocation7 + $0x150] sm:$0xff]
    %v123 = vld [vmem:[#allocation7 + $0x158] sm:$0xff]
    %v124 = vld [vmem:[#allocation7 + $0x160] sm:$0xff]
    %v125 = vld [vmem:[#allocation7 + $0x168] sm:$0xff]
    %v126 = vld [vmem:[#allocation7 + $0x170] sm:$0xff]
    %v127 = vld [vmem:[#allocation7 + $0x178] sm:$0xff]
    %v128 = vld [vmem:[#allocation8] sm:$0xff]
    %v129 = vld [vmem:[#allocation8 + $0x8] sm:$0xff]
    %v130 = vld [vmem:[#allocation8 + $0x10] sm:$0xff]
    %v131 = vld [vmem:[#allocation8 + $0x18] sm:$0xff]
    %v132 = vld [vmem:[#allocation8 + $0x20] sm:$0xff]
    %v133 = vld [vmem:[#allocation8 + $0x28] sm:$0xff]
    %v134 = vld [vmem:[#allocation8 + $0x30] sm:$0xff]
    %v135 = vld [vmem:[#allocation8 + $0x38] sm:$0xff]
    %v136 = vld [vmem:[#allocation8 + $0x40] sm:$0xff]
    %v137 = vld [vmem:[#allocation8 + $0x48] sm:$0xff]
    %v138 = vld [vmem:[#allocation8 + $0x50] sm:$0xff]
    %v139 = vld [vmem:[#allocation8 + $0x58] sm:$0xff]
    %v140 = vld [vmem:[#allocation8 + $0x60] sm:$0xff]
    %v141 = vld [vmem:[#allocation8 + $0x68] sm:$0xff]
    %v142 = vld [vmem:[#allocation8 + $0x70] sm:$0xff]
    %v143 = vld [vmem:[#allocation8 + $0x78] sm:$0xff]
    %v144 = vld [vmem:[#allocation8 + $0x80] sm:$0xff]
    %v145 = vld [vmem:[#allocation8 + $0x88] sm:$0xff]
    %v146 = vld [vmem:[#allocation8 + $0x90] sm:$0xff]
    %v147 = vld [vmem:[#allocation8 + $0x98] sm:$0xff]
    %v148 = vld [vmem:[#allocation8 + $0xa0] sm:$0xff]
    %v149 = vld [vmem:[#allocation8 + $0xa8] sm:$0xff]
    %v150 = vld [vmem:[#allocation8 + $0xb0] sm:$0xff]
    %v151 = vld [vmem:[#allocation8 + $0xb8] sm:$0xff]
    %v152 = vld [vmem:[#allocation8 + $0xc0] sm:$0xff]
    %v153 = vld [vmem:[#allocation8 + $0xc8] sm:$0xff]
    %v154 = vld [vmem:[#allocation8 + $0xd0] sm:$0xff]
    %v155 = vld [vmem:[#allocation8 + $0xd8] sm:$0xff]
    %v156 = vld [vmem:[#allocation8 + $0xe0] sm:$0xff]
    %v157 = vld [vmem:[#allocation8 + $0xe8] sm:$0xff]
    %v158 = vld [vmem:[#allocation8 + $0xf0] sm:$0xff]
    %v159 = vld [vmem:[#allocation8 + $0xf8] sm:$0xff]
    %v160 = vld [vmem:[#allocation8 + $0x100] sm:$0xff]
    %v161 = vld [vmem:[#allocation8 + $0x108] sm:$0xff]
    %v162 = vld [vmem:[#allocation8 + $0x110] sm:$0xff]
    %v163 = vld [vmem:[#allocation8 + $0x118] sm:$0xff]
    %v164 = vld [vmem:[#allocation8 + $0x120] sm:$0xff]
    %v165 = vld [vmem:[#allocation8 + $0x128] sm:$0xff]
    %v166 = vld [vmem:[#allocation8 + $0x130] sm:$0xff]
    %v167 = vld [vmem:[#allocation8 + $0x138] sm:$0xff]
    %v168 = vld [vmem:[#allocation8 + $0x140] sm:$0xff]
    %v169 = vld [vmem:[#allocation8 + $0x148] sm:$0xff]
    %v170 = vld [vmem:[#allocation8 + $0x150] sm:$0xff]
    %v171 = vld [vmem:[#allocation8 + $0x158] sm:$0xff]
    %v172 = vld [vmem:[#allocation8 + $0x160] sm:$0xff]
    %v173 = vld [vmem:[#allocation8 + $0x168] sm:$0xff]
    %v174 = vld [vmem:[#allocation8 + $0x170] sm:$0xff]
    %v175 = vld [vmem:[#allocation8 + $0x178] sm:$0xff]
    %v176 = vld [vmem:[%s4] sm:$0x3f]
    %v178 = vlaneseq
    %v179 = vshrl.u32 %v178, 7
    %v180 = vsub.s32 0, %v179
    %v181 = vrot.slane %v176, %v180
    %v182 = vlaneseq
    %v183 = vshrl.u32 %v182, 7
    %v184 = vsub.s32 2, %v183
    %v185 = vrot.slane %v176, %v184
    %v186 = vlaneseq
    %v187 = vshrl.u32 %v186, 7
    %v188 = vsub.s32 4, %v187
    %v189 = vrot.slane %v176, %v188
    %v193 = vlaneseq
    %v194 = vshrl.u32 %v193, 7
    %v195 = vsub.s32 0, %v194
    %v196 = vrot.slane %v181, %v195
    %v197 = vlaneseq
    %v198 = vshrl.u32 %v197, 7
    %v199 = vsub.s32 0, %v198
    %v200 = vrot.slane %v185, %v199
    %v201 = vlaneseq
    %v202 = vshrl.u32 %v201, 7
    %v203 = vsub.s32 0, %v202
    %v204 = vrot.slane %v189, %v203
    %205 = vmatprep.subr.mxu0 %v81
    %206 = vmatpush1.msra.mxu0 %v80
    %207 = vmatprep.subr.mxu0 %v84
    %208 = vmatpush1.msra.mxu0 %v83
    %209 = vmatprep.subr.mxu0 %v87
    %210 = vmatpush1.msra.mxu0 %v86
    %211 = vmatprep.subr.mxu0 %v90
    %212 = vmatpush1.msra.mxu0 %v89
    %213 = vmatprep.subr.mxu0 %v93
    %214 = vmatpush1.msra.mxu0 %v92
    %215 = vmatprep.subr.mxu0 %v96
    %216 = vmatpush1.msra.mxu0 %v95
    %217 = vmatprep.subr.mxu0 %v99
    %218 = vmatpush1.msra.mxu0 %v98
    %219 = vmatprep.subr.mxu0 %v102
    %220 = vmatpush1.msra.mxu0 %v101
    %221 = vmatprep.subr.mxu0 %v105
    %222 = vmatpush1.msra.mxu0 %v104
    %223 = vmatprep.subr.mxu0 %v108
    %224 = vmatpush1.msra.mxu0 %v107
    %225 = vmatprep.subr.mxu0 %v111
    %226 = vmatpush1.msra.mxu0 %v110
    %227 = vmatprep.subr.mxu0 %v114
    %228 = vmatpush1.msra.mxu0 %v113
    %229 = vmatprep.subr.mxu0 %v117
    %230 = vmatpush1.msra.mxu0 %v116
    %231 = vmatprep.subr.mxu0 %v120
    %232 = vmatpush1.msra.mxu0 %v119
    %233 = vmatprep.subr.mxu0 %v123
    %234 = vmatpush1.msra.mxu0 %v122
    %235 = vmatprep.subr.mxu0 %v126
    %236 = vmatpush1.msra.mxu0 %v125
    %237 = vmatprep.subr.mxu0 0.0
    %238 = vmatpush1.msra.mxu0 0.0
    %239 = vmatprep.subr.mxu0 0.0
    %240 = vmatpush1.msra.mxu0 0.0
    %241 = vmatprep.subr.mxu0 0.0
    %242 = vmatpush1.msra.mxu0 0.0
    %243 = vmatprep.subr.mxu0 0.0
    %244 = vmatpush1.msra.mxu0 0.0
    %245 = vmatprep.subr.mxu0 0.0
    %246 = vmatpush1.msra.mxu0 0.0
    %247 = vmatprep.subr.mxu0 0.0
    %248 = vmatpush1.msra.mxu0 0.0
    %249 = vmatprep.subr.mxu0 0.0
    %250 = vmatpush1.msra.mxu0 0.0
    %251 = vmatprep.subr.mxu0 0.0
    %252 = vmatpush1.msra.mxu0 0.0
    %253 = vmatprep.subr.mxu0 0.0
    %254 = vmatpush1.msra.mxu0 0.0
    %255 = vmatprep.subr.mxu0 0.0
    %256 = vmatpush1.msra.mxu0 0.0
    %257 = vmatprep.subr.mxu0 0.0
    %258 = vmatpush1.msra.mxu0 0.0
    %259 = vmatprep.subr.mxu0 0.0
    %260 = vmatpush1.msra.mxu0 0.0
    %261 = vmatprep.subr.mxu0 0.0
    %262 = vmatpush1.msra.mxu0 0.0
    %263 = vmatprep.subr.mxu0 0.0
    %264 = vmatpush1.msra.mxu0 0.0
    %265 = vmatprep.subr.mxu0 0.0
    %266 = vmatpush1.msra.mxu0 0.0
    %267 = vmatprep.subr.mxu0 0.0
    %268 = vmatpush1.msra.mxu0 0.0
    %269 = vmatprep.mubr.f32.mxu0 0.0
    %270 = vmatmul.mubr.f32.gmra.mrb[0].mxu0 %v76
    %v271 = vpop.f32.mrb[0].mxu0
    %v272 = vadd.f32 %v196, %v271
    %v273 = vpop.f32.mrb[0].mxu0
    %v274 = vadd.f32 %v200, %v273
    %275 = vmatprep.mubr.f32.mxu0 0.0
    %276 = vmatmul.mubr.f32.gmra.mrb[0].mxu0 %v77
    %v277 = vpop.f32.mrb[0].mxu0
    %v278 = vadd.f32 %v196, %v277
    %v279 = vpop.f32.mrb[0].mxu0
    %v280 = vadd.f32 %v200, %v279
    %281 = vdwg.mxu0
    %282 = vmatprep.subr.mxu0 0.0
    %283 = vmatpush1.msra.mxu0 %v82
    %284 = vmatprep.subr.mxu0 0.0
    %285 = vmatpush1.msra.mxu0 %v85
    %286 = vmatprep.subr.mxu0 0.0
    %287 = vmatpush1.msra.mxu0 %v88
    %288 = vmatprep.subr.mxu0 0.0
    %289 = vmatpush1.msra.mxu0 %v91
    %290 = vmatprep.subr.mxu0 0.0
    %291 = vmatpush1.msra.mxu0 %v94
    %292 = vmatprep.subr.mxu0 0.0
    %293 = vmatpush1.msra.mxu0 %v97
    %294 = vmatprep.subr.mxu0 0.0
    %295 = vmatpush1.msra.mxu0 %v100
    %296 = vmatprep.subr.mxu0 0.0
    %297 = vmatpush1.msra.mxu0 %v103
    %298 = vmatprep.subr.mxu0 0.0
    %299 = vmatpush1.msra.mxu0 %v106
    %300 = vmatprep.subr.mxu0 0.0
    %301 = vmatpush1.msra.mxu0 %v109
    %302 = vmatprep.subr.mxu0 0.0
    %303 = vmatpush1.msra.mxu0 %v112
    %304 = vmatprep.subr.mxu0 0.0
    %305 = vmatpush1.msra.mxu0 %v115
    %306 = vmatprep.subr.mxu0 0.0
    %307 = vmatpush1.msra.mxu0 %v118
    %308 = vmatprep.subr.mxu0 0.0
    %309 = vmatpush1.msra.mxu0 %v121
    %310 = vmatprep.subr.mxu0 0.0
    %311 = vmatpush1.msra.mxu0 %v124
    %312 = vmatprep.subr.mxu0 0.0
    %313 = vmatpush1.msra.mxu0 %v127
    %314 = vmatprep.subr.mxu0 0.0
    %315 = vmatpush1.msra.mxu0 0.0
    %316 = vmatprep.subr.mxu0 0.0
    %317 = vmatpush1.msra.mxu0 0.0
    %318 = vmatprep.subr.mxu0 0.0
    %319 = vmatpush1.msra.mxu0 0.0
    %320 = vmatprep.subr.mxu0 0.0
    %321 = vmatpush1.msra.mxu0 0.0
    %322 = vmatprep.subr.mxu0 0.0
    %323 = vmatpush1.msra.mxu0 0.0
    %324 = vmatprep.subr.mxu0 0.0
    %325 = vmatpush1.msra.mxu0 0.0
    %326 = vmatprep.subr.mxu0 0.0
    %327 = vmatpush1.msra.mxu0 0.0
    %328 = vmatprep.subr.mxu0 0.0
    %329 = vmatpush1.msra.mxu0 0.0
    %330 = vmatprep.subr.mxu0 0.0
    %331 = vmatpush1.msra.mxu0 0.0
    %332 = vmatprep.subr.mxu0 0.0
    %333 = vmatpush1.msra.mxu0 0.0
    %334 = vmatprep.subr.mxu0 0.0
    %335 = vmatpush1.msra.mxu0 0.0
    %336 = vmatprep.subr.mxu0 0.0
    %337 = vmatpush1.msra.mxu0 0.0
    %338 = vmatprep.subr.mxu0 0.0
    %339 = vmatpush1.msra.mxu0 0.0
    %340 = vmatprep.subr.mxu0 0.0
    %341 = vmatpush1.msra.mxu0 0.0
    %342 = vmatprep.subr.mxu0 0.0
    %343 = vmatpush1.msra.mxu0 0.0
    %344 = vmatprep.subr.mxu0 0.0
    %345 = vmatpush1.msra.mxu0 0.0
    %346 = vmatprep.mubr.f32.mxu0 0.0
    %347 = vmatmul.mubr.f32.gmra.mrb[0].mxu0 %v76
    %v348 = vpop.f32.mrb[0].mxu0
    %v349 = vadd.f32 %v204, %v348
    %v350 = vpop.f32.mrb[0].mxu0
    %351 = vmatprep.mubr.f32.mxu0 0.0
    %352 = vmatmul.mubr.f32.gmra.mrb[0].mxu0 %v77
    %v353 = vpop.f32.mrb[0].mxu0
    %v354 = vadd.f32 %v204, %v353
    %v355 = vpop.f32.mrb[0].mxu0
    %356 = vdwg.mxu0
    %v357 = vlaneseq
    %v358 = vshrl.u32 %v357, 7
    %v359 = vsub.s32 1, %v358
    %v360 = vrot.slane %v176, %v359
    %v361 = vlaneseq
    %v362 = vshrl.u32 %v361, 7
    %v363 = vsub.s32 3, %v362
    %v364 = vrot.slane %v176, %v363
    %v365 = vlaneseq
    %v366 = vshrl.u32 %v365, 7
    %v367 = vsub.s32 5, %v366
    %v368 = vrot.slane %v176, %v367
    %v372 = vlaneseq
    %v373 = vshrl.u32 %v372, 7
    %v374 = vsub.s32 1, %v373
    %v375 = vrot.slane %v360, %v374
    %v376 = vlaneseq
    %v377 = vshrl.u32 %v376, 7
    %v378 = vsub.s32 1, %v377
    %v379 = vrot.slane %v364, %v378
    %v380 = vlaneseq
    %v381 = vshrl.u32 %v380, 7
    %v382 = vsub.s32 1, %v381
    %v383 = vrot.slane %v368, %v382
    %384 = vmatprep.subr.mxu0 %v129
    %385 = vmatpush1.msra.mxu0 %v128
    %386 = vmatprep.subr.mxu0 %v132
    %387 = vmatpush1.msra.mxu0 %v131
    %388 = vmatprep.subr.mxu0 %v135
    %389 = vmatpush1.msra.mxu0 %v134
    %390 = vmatprep.subr.mxu0 %v138
    %391 = vmatpush1.msra.mxu0 %v137
    %392 = vmatprep.subr.mxu0 %v141
    %393 = vmatpush1.msra.mxu0 %v140
    %394 = vmatprep.subr.mxu0 %v144
    %395 = vmatpush1.msra.mxu0 %v143
    %396 = vmatprep.subr.mxu0 %v147
    %397 = vmatpush1.msra.mxu0 %v146
    %398 = vmatprep.subr.mxu0 %v150
    %399 = vmatpush1.msra.mxu0 %v149
    %400 = vmatprep.subr.mxu0 %v153
    %401 = vmatpush1.msra.mxu0 %v152
    %402 = vmatprep.subr.mxu0 %v156
    %403 = vmatpush1.msra.mxu0 %v155
    %404 = vmatprep.subr.mxu0 %v159
    %405 = vmatpush1.msra.mxu0 %v158
    %406 = vmatprep.subr.mxu0 %v162
    %407 = vmatpush1.msra.mxu0 %v161
    %408 = vmatprep.subr.mxu0 %v165
    %409 = vmatpush1.msra.mxu0 %v164
    %410 = vmatprep.subr.mxu0 %v168
    %411 = vmatpush1.msra.mxu0 %v167
    %412 = vmatprep.subr.mxu0 %v171
    %413 = vmatpush1.msra.mxu0 %v170
    %414 = vmatprep.subr.mxu0 %v174
    %415 = vmatpush1.msra.mxu0 %v173
    %416 = vmatprep.subr.mxu0 0.0
    %417 = vmatpush1.msra.mxu0 0.0
    %418 = vmatprep.subr.mxu0 0.0
    %419 = vmatpush1.msra.mxu0 0.0
    %420 = vmatprep.subr.mxu0 0.0
    %421 = vmatpush1.msra.mxu0 0.0
    %422 = vmatprep.subr.mxu0 0.0
    %423 = vmatpush1.msra.mxu0 0.0
    %424 = vmatprep.subr.mxu0 0.0
    %425 = vmatpush1.msra.mxu0 0.0
    %426 = vmatprep.subr.mxu0 0.0
    %427 = vmatpush1.msra.mxu0 0.0
    %428 = vmatprep.subr.mxu0 0.0
    %429 = vmatpush1.msra.mxu0 0.0
    %430 = vmatprep.subr.mxu0 0.0
    %431 = vmatpush1.msra.mxu0 0.0
    %432 = vmatprep.subr.mxu0 0.0
    %433 = vmatpush1.msra.mxu0 0.0
    %434 = vmatprep.subr.mxu0 0.0
    %435 = vmatpush1.msra.mxu0 0.0
    %436 = vmatprep.subr.mxu0 0.0
    %437 = vmatpush1.msra.mxu0 0.0
    %438 = vmatprep.subr.mxu0 0.0
    %439 = vmatpush1.msra.mxu0 0.0
    %440 = vmatprep.subr.mxu0 0.0
    %441 = vmatpush1.msra.mxu0 0.0
    %442 = vmatprep.subr.mxu0 0.0
    %443 = vmatpush1.msra.mxu0 0.0
    %444 = vmatprep.subr.mxu0 0.0
    %445 = vmatpush1.msra.mxu0 0.0
    %446 = vmatprep.subr.mxu0 0.0
    %447 = vmatpush1.msra.mxu0 0.0
    %448 = vmatprep.mubr.f32.mxu0 0.0
    %449 = vmatmul.mubr.f32.gmra.mrb[0].mxu0 %v78
    %v450 = vpop.f32.mrb[0].mxu0
    %v451 = vadd.f32 %v375, %v450
    %v452 = vpop.f32.mrb[0].mxu0
    %v453 = vadd.f32 %v379, %v452
    %454 = vmatprep.mubr.f32.mxu0 0.0
    %455 = vmatmul.mubr.f32.gmra.mrb[0].mxu0 %v79
    %v456 = vpop.f32.mrb[0].mxu0
    %v457 = vadd.f32 %v375, %v456
    %v458 = vpop.f32.mrb[0].mxu0
    %v459 = vadd.f32 %v379, %v458
    %460 = vdwg.mxu0
    %461 = vmatprep.subr.mxu0 0.0
    %462 = vmatpush1.msra.mxu0 %v130
    %463 = vmatprep.subr.mxu0 0.0
    %464 = vmatpush1.msra.mxu0 %v133
    %465 = vmatprep.subr.mxu0 0.0
    %466 = vmatpush1.msra.mxu0 %v136
    %467 = vmatprep.subr.mxu0 0.0
    %468 = vmatpush1.msra.mxu0 %v139
    %469 = vmatprep.subr.mxu0 0.0
    %470 = vmatpush1.msra.mxu0 %v142
    %471 = vmatprep.subr.mxu0 0.0
    %472 = vmatpush1.msra.mxu0 %v145
    %473 = vmatprep.subr.mxu0 0.0
    %474 = vmatpush1.msra.mxu0 %v148
    %475 = vmatprep.subr.mxu0 0.0
    %476 = vmatpush1.msra.mxu0 %v151
    %477 = vmatprep.subr.mxu0 0.0
    %478 = vmatpush1.msra.mxu0 %v154
    %479 = vmatprep.subr.mxu0 0.0
    %480 = vmatpush1.msra.mxu0 %v157
    %481 = vmatprep.subr.mxu0 0.0
    %482 = vmatpush1.msra.mxu0 %v160
    %483 = vmatprep.subr.mxu0 0.0
    %484 = vmatpush1.msra.mxu0 %v163
    %485 = vmatprep.subr.mxu0 0.0
    %486 = vmatpush1.msra.mxu0 %v166
    %487 = vmatprep.subr.mxu0 0.0
    %488 = vmatpush1.msra.mxu0 %v169
    %489 = vmatprep.subr.mxu0 0.0
    %490 = vmatpush1.msra.mxu0 %v172
    %491 = vmatprep.subr.mxu0 0.0
    %492 = vmatpush1.msra.mxu0 %v175
    %493 = vmatprep.subr.mxu0 0.0
    %494 = vmatpush1.msra.mxu0 0.0
    %495 = vmatprep.subr.mxu0 0.0
    %496 = vmatpush1.msra.mxu0 0.0
    %497 = vmatprep.subr.mxu0 0.0
    %498 = vmatpush1.msra.mxu0 0.0
    %499 = vmatprep.subr.mxu0 0.0
    %500 = vmatpush1.msra.mxu0 0.0
    %501 = vmatprep.subr.mxu0 0.0
    %502 = vmatpush1.msra.mxu0 0.0
    %503 = vmatprep.subr.mxu0 0.0
    %504 = vmatpush1.msra.mxu0 0.0
    %505 = vmatprep.subr.mxu0 0.0
    %506 = vmatpush1.msra.mxu0 0.0
    %507 = vmatprep.subr.mxu0 0.0
    %508 = vmatpush1.msra.mxu0 0.0
    %509 = vmatprep.subr.mxu0 0.0
    %510 = vmatpush1.msra.mxu0 0.0
    %511 = vmatprep.subr.mxu0 0.0
    %512 = vmatpush1.msra.mxu0 0.0
    %513 = vmatprep.subr.mxu0 0.0
    %514 = vmatpush1.msra.mxu0 0.0
    %515 = vmatprep.subr.mxu0 0.0
    %516 = vmatpush1.msra.mxu0 0.0
    %517 = vmatprep.subr.mxu0 0.0
    %518 = vmatpush1.msra.mxu0 0.0
    %519 = vmatprep.subr.mxu0 0.0
    %520 = vmatpush1.msra.mxu0 0.0
    %521 = vmatprep.subr.mxu0 0.0
    %522 = vmatpush1.msra.mxu0 0.0
    %523 = vmatprep.subr.mxu0 0.0
    %524 = vmatpush1.msra.mxu0 0.0
    %525 = vmatprep.mubr.f32.mxu0 0.0
    %526 = vmatmul.mubr.f32.gmra.mrb[0].mxu0 %v78
    %v527 = vpop.f32.mrb[0].mxu0
    %v528 = vadd.f32 %v383, %v527
    %v529 = vpop.f32.mrb[0].mxu0
    %530 = vmatprep.mubr.f32.mxu0 0.0
    %531 = vmatmul.mubr.f32.gmra.mrb[0].mxu0 %v79
    %v532 = vpop.f32.mrb[0].mxu0
    %v533 = vadd.f32 %v383, %v532
    %v534 = vpop.f32.mrb[0].mxu0
    %535 = vdwg.mxu0
    %v536 = vadd.f32 %v272, %v451
    %v537 = vadd.f32 %v278, %v457
    %v538 = vxor.u32 %v536, 2147483648
    %v539 = vxor.u32 %v537, 2147483648
    %v540 = vmul.f32 %v538, 1.442695
    %v541 = vpow.pop %v540
    %v542 = vmul.f32 %v539, 1.442695
    %v543 = vpow.pop %v542
    %v544 = vadd.f32 %v541, 1.0
    %v545 = vadd.f32 %v543, 1.0
    %v546 = vrcp.pop %v544
    %v547 = vmul.f32 1.0, %v546
    %v548 = vrcp.pop %v545
    %v549 = vmul.f32 1.0, %v548
    %v550 = vadd.f32 %v274, %v453
    %v551 = vadd.f32 %v280, %v459
    %v552 = vxor.u32 %v550, 2147483648
    %v553 = vxor.u32 %v551, 2147483648
    %v554 = vmul.f32 %v552, 1.442695
    %v555 = vpow.pop %v554
    %v556 = vmul.f32 %v553, 1.442695
    %v557 = vpow.pop %v556
    %v558 = vadd.f32 %v555, 1.0
    %v559 = vadd.f32 %v557, 1.0
    %v560 = vrcp.pop %v558
    %v561 = vmul.f32 1.0, %v560
    %v562 = vrcp.pop %v559
    %v563 = vmul.f32 1.0, %v562
    %v564 = vmul.f32 %v547, %v528
    %v565 = vmul.f32 %v549, %v533
    %v566 = vadd.f32 %v349, %v564
    %v567 = vadd.f32 %v354, %v565
    %v568 = vtanh.pop %v566
    %v569 = vtanh.pop %v567
    %v570 = vsub.f32 1.0, %v561
    %v571 = vsub.f32 1.0, %v563
    %v572 = vmul.f32 %v570, %v568
    %v573 = vmul.f32 %v571, %v569
    %v574 = vmul.f32 %v561, %v78
    %v575 = vmul.f32 %v563, %v79
    %v576 = vadd.f32 %v572, %v574
    %v577 = vadd.f32 %v573, %v575
    %578 = vst [vmem:[#allocation10] sm:$0xff] %v576
    %579 = vst [vmem:[#allocation10 + $0x8] sm:$0xff] %v577
    // Predicated region
    $region38: #{tpu_custom_call.1} parent=1 // pred_check
      _
    $region39: #{tpu_custom_call.1} parent=1 // pred_check_branch
      %581 = sbr.rel (0) target = $region41
    $region40: #{tpu_custom_call.1} parent=1 // pred_region
      %s583 = ssub.s32 256, 256
      %584 = vsyncadd [#allocation4], %s583
      %s585 = sshll.u32 [#allocation10], 4
      %s586 = int_to_ptr.vmem [resolvable:$true] %s585
      %591 = dma.vmem_to_hbm [thread:$0]  %s586, 256, %s5, [#allocation4], 128, 128, 8
    $region41: #{tpu_custom_call.1} parent=1 // pred_fallthru
      _
    // Predicated region
    $region42: #{tpu_custom_call.1} parent=1 // pred_check
      _
    $region43: #{tpu_custom_call.1} parent=1 // pred_check_branch
      %593 = sbr.rel (0) target = $region45
    $region44: #{tpu_custom_call.1} parent=1 // pred_region
      %594 = dma.done [#allocation4], 256
    $region45: #{tpu_custom_call.1} parent=1 // pred_fallthru
      _
    %595 = vsyncpa [#allocation3], 1
    %596 = vsyncpa [#allocation6], 1
    %597 = vsyncpa [#allocation9], 1
    %598 = vsyncpa [#allocation4], 1

// kernel: tpu_custom_call.1
$region0: #{tpu_custom_call.1}
  #allocation0 [shape = 'u32[]', space=smem, size = 0x4, offset = 0x4, fixed_abs, tag = 'smem constant byte address 0x4 - core index']
  #allocation1 [shape = 'u32[144,128]{1,0:T(1,128)}', space=vmem, size = 0x12000, scoped, tag = 'internal scratch']
  %s0 = inlined_call_operand.hbm [shape: f32[16,128], index: 0, kind: input, shape index: {}]
  %s1 = inlined_call_operand.hbm [shape: f32[16,128], index: 1, kind: input, shape index: {}]
  %s2 = inlined_call_operand.hbm [shape: f32[128,384], index: 2, kind: input, shape index: {}]
  %s3 = inlined_call_operand.hbm [shape: f32[128,384], index: 3, kind: input, shape index: {}]
  %s4 = inlined_call_operand.vmem [shape: f32[2,384], index: 4, kind: input, shape index: {}]
  %s5 = inlined_call_operand.hbm [shape: f32[16,128], index: 5, kind: output, shape index: {}]
  %s6 = sld [smem:[#allocation0]]
  $region46: #{tpu_custom_call.1} parent=0
    _
  %s8 = ssub.s32 1, %s6
  %s9 = scalar_select 0, %s8, %s6
  $region1: #{tpu_custom_call.1} parent=0
    #allocation2 [shape = 'u8[8192]{0}', space=vmem, size = 0x2000, scoped, tag = 'input window, operand 0, single buffered']
    #allocation3 [shape = 's32[1]{0}', space=sflag, size = 0x4, scoped, tag = 'scoped memory for tpu_custom_call.1']
    #allocation4 [shape = 's32[1]{0}', space=sflag, size = 0x4, scoped, tag = 'scoped memory for tpu_custom_call.1']
    #allocation5 [shape = 'u8[8192]{0}', space=vmem, size = 0x2000, scoped, tag = 'input window, operand 1, single buffered']
    #allocation6 [shape = 's32[1]{0}', space=sflag, size = 0x4, scoped, tag = 'scoped memory for tpu_custom_call.1']
    #allocation7 [shape = 'u8[196608]{0}', space=vmem, size = 0x30000, scoped, tag = 'input window, operand 2, single buffered']
    #allocation8 [shape = 'u8[196608]{0}', space=vmem, size = 0x30000, scoped, tag = 'input window, operand 3, single buffered']
    #allocation9 [shape = 's32[1]{0}', space=sflag, size = 0x4, scoped, tag = 'scoped memory for tpu_custom_call.1']
    #allocation10 [shape = 'u8[8192]{0}', space=vmem, size = 0x2000, scoped, tag = 'output window, operand 0, single buffered']
    %10 = vsyncpa [#allocation3], 0
    %11 = vsyncpa [#allocation6], 0
    %12 = vsyncpa [#allocation9], 0
    %13 = vsyncpa [#allocation4], 0
    // Predicated region
    $region2: #{tpu_custom_call.1} parent=1 // pred_check
      _
    $region3: #{tpu_custom_call.1} parent=1 // pred_check_branch
      %15 = sbr.rel (0) target = $region5
    $region4: #{tpu_custom_call.1} parent=1 // pred_region
      %s17 = ssub.s32 256, 256
      %18 = vsyncadd [#allocation3], %s17
      %s19 = sshll.u32 [#allocation2], 4
      %s20 = int_to_ptr.vmem [resolvable:$true] %s19
      %25 = dma.hbm_to_vmem [thread:$0]  %s0, 256, %s20, [#allocation3], 128, 128, 8
    $region5: #{tpu_custom_call.1} parent=1 // pred_fallthru
      _
    // Predicated region
    $region6: #{tpu_custom_call.1} parent=1 // pred_check
      _
    $region7: #{tpu_custom_call.1} parent=1 // pred_check_branch
      %27 = sbr.rel (0) target = $region9
    $region8: #{tpu_custom_call.1} parent=1 // pred_region
      %s29 = ssub.s32 256, 256
      %30 = vsyncadd [#allocation6], %s29
      %s31 = sshll.u32 [#allocation5], 4
      %s32 = int_to_ptr.vmem [resolvable:$true] %s31
      %37 = dma.hbm_to_vmem [thread:$0]  %s1, 256, %s32, [#allocation6], 128, 128, 8
    $region9: #{tpu_custom_call.1} parent=1 // pred_fallthru
      _
    // Predicated region
    $region10: #{tpu_custom_call.1} parent=1 // pred_check
      _
    $region11: #{tpu_custom_call.1} parent=1 // pred_check_branch
      %39 = sbr.rel (0) target = $region13
    $region12: #{tpu_custom_call.1} parent=1 // pred_region
      %s41 = ssub.s32 6144, 6144
      %42 = vsyncadd [#allocation6], %s41
      %s43 = sshll.u32 [#allocation7], 4
      %s44 = int_to_ptr.vmem [resolvable:$true] %s43
      %49 = dma.hbm_to_vmem [thread:$0]  %s2, 6144, %s44, [#allocation6], 384, 384, 24
    $region13: #{tpu_custom_call.1} parent=1 // pred_fallthru
      _
    // Predicated region
    $region14: #{tpu_custom_call.1} parent=1 // pred_check
      _
    $region15: #{tpu_custom_call.1} parent=1 // pred_check_branch
      %51 = sbr.rel (0) target = $region17
    $region16: #{tpu_custom_call.1} parent=1 // pred_region
      %s53 = ssub.s32 6144, 6144
      %54 = vsyncadd [#allocation9], %s53
      %s55 = sshll.u32 [#allocation8], 4
      %s56 = int_to_ptr.vmem [resolvable:$true] %s55
      %61 = dma.hbm_to_vmem [thread:$0]  %s3, 6144, %s56, [#allocation9], 384, 384, 24
    $region17: #{tpu_custom_call.1} parent=1 // pred_fallthru
      _
    // Predicated region
    $region18: #{tpu_custom_call.1} parent=1 // pred_check
      _
    $region19: #{tpu_custom_call.1} parent=1 // pred_check_branch
      %63 = sbr.rel (0) target = $region21
    $region20: #{tpu_custom_call.1} parent=1 // pred_region
      _
    $region21: #{tpu_custom_call.1} parent=1 // pred_fallthru
      _
    // Predicated region
    $region22: #{tpu_custom_call.1} parent=1 // pred_check
      _
    $region23: #{tpu_custom_call.1} parent=1 // pred_check_branch
      %65 = sbr.rel (0) target = $region25
    $region24: #{tpu_custom_call.1} parent=1 // pred_region
      %66 = dma.done [#allocation3], 256
    $region25: #{tpu_custom_call.1} parent=1 // pred_fallthru
      _
    // Predicated region
    $region26: #{tpu_custom_call.1} parent=1 // pred_check
      _
    $region27: #{tpu_custom_call.1} parent=1 // pred_check_branch
      %68 = sbr.rel (0) target = $region29
    $region28: #{tpu_custom_call.1} parent=1 // pred_region
      %69 = dma.done [#allocation6], 256
    $region29: #{tpu_custom_call.1} parent=1 // pred_fallthru
      _
    // Predicated region
    $region30: #{tpu_custom_call.1} parent=1 // pred_check
      _
    $region31: #{tpu_custom_call.1} parent=1 // pred_check_branch
      %71 = sbr.rel (0) target = $region33
    $region32: #{tpu_custom_call.1} parent=1 // pred_region
      %72 = dma.done [#allocation6], 6144
    $region33: #{tpu_custom_call.1} parent=1 // pred_fallthru
      _
    // Predicated region
    $region34: #{tpu_custom_call.1} parent=1 // pred_check
      _
    $region35: #{tpu_custom_call.1} parent=1 // pred_check_branch
      %74 = sbr.rel (0) target = $region37
    $region36: #{tpu_custom_call.1} parent=1 // pred_region
      %75 = dma.done [#allocation9], 6144
    $region37: #{tpu_custom_call.1} parent=1 // pred_fallthru
      _
    %v76 = vld [vmem:[#allocation2] sm:$0xff]
    %v77 = vld [vmem:[#allocation2 + $0x8] sm:$0xff]
    %v78 = vld [vmem:[#allocation5] sm:$0xff]
    %v79 = vld [vmem:[#allocation5 + $0x8] sm:$0xff]
    %v80 = vld [vmem:[#allocation7] sm:$0xff]
    %v81 = vld [vmem:[#allocation7 + $0x8] sm:$0xff]
    %v82 = vld [vmem:[#allocation7 + $0x10] sm:$0xff]
    %v83 = vld [vmem:[#allocation7 + $0x18] sm:$0xff]
    %v84 = vld [vmem:[#allocation7 + $0x20] sm:$0xff]
    %v85 = vld [vmem:[#allocation7 + $0x28] sm:$0xff]
    %v86 = vld [vmem:[#allocation7 + $0x30] sm:$0xff]
    %v87 = vld [vmem:[#allocation7 + $0x38] sm:$0xff]
    %v88 = vld [vmem:[#allocation7 + $0x40] sm:$0xff]
    %v89 = vld [vmem:[#allocation7 + $0x48] sm:$0xff]
    %v90 = vld [vmem:[#allocation7 + $0x50] sm:$0xff]
    %v91 = vld [vmem:[#allocation7 + $0x58] sm:$0xff]
    %v92 = vld [vmem:[#allocation7 + $0x60] sm:$0xff]
    %v93 = vld [vmem:[#allocation7 + $0x68] sm:$0xff]
    %v94 = vld [vmem:[#allocation7 + $0x70] sm:$0xff]
    %v95 = vld [vmem:[#allocation7 + $0x78] sm:$0xff]
    %v96 = vld [vmem:[#allocation7 + $0x80] sm:$0xff]
    %v97 = vld [vmem:[#allocation7 + $0x88] sm:$0xff]
    %v98 = vld [vmem:[#allocation7 + $0x90] sm:$0xff]
    %v99 = vld [vmem:[#allocation7 + $0x98] sm:$0xff]
    %v100 = vld [vmem:[#allocation7 + $0xa0] sm:$0xff]
    %v101 = vld [vmem:[#allocation7 + $0xa8] sm:$0xff]
    %v102 = vld [vmem:[#allocation7 + $0xb0] sm:$0xff]
    %v103 = vld [vmem:[#allocation7 + $0xb8] sm:$0xff]
    %v104 = vld [vmem:[#allocation7 + $0xc0] sm:$0xff]
    %v105 = vld [vmem:[#allocation7 + $0xc8] sm:$0xff]
    %v106 = vld [vmem:[#allocation7 + $0xd0] sm:$0xff]
    %v107 = vld [vmem:[#allocation7 + $0xd8] sm:$0xff]
    %v108 = vld [vmem:[#allocation7 + $0xe0] sm:$0xff]
    %v109 = vld [vmem:[#allocation7 + $0xe8] sm:$0xff]
    %v110 = vld [vmem:[#allocation7 + $0xf0] sm:$0xff]
    %v111 = vld [vmem:[#allocation7 + $0xf8] sm:$0xff]
    %v112 = vld [vmem:[#allocation7 + $0x100] sm:$0xff]
    %v113 = vld [vmem:[#allocation7 + $0x108] sm:$0xff]
    %v114 = vld [vmem:[#allocation7 + $0x110] sm:$0xff]
    %v115 = vld [vmem:[#allocation7 + $0x118] sm:$0xff]
    %v116 = vld [vmem:[#allocation7 + $0x120] sm:$0xff]
    %v117 = vld [vmem:[#allocation7 + $0x128] sm:$0xff]
    %v118 = vld [vmem:[#allocation7 + $0x130] sm:$0xff]
    %v119 = vld [vmem:[#allocation7 + $0x138] sm:$0xff]
    %v120 = vld [vmem:[#allocation7 + $0x140] sm:$0xff]
    %v121 = vld [vmem:[#allocation7 + $0x148] sm:$0xff]
    %v122 = vld [vmem:[#allocation7 + $0x150] sm:$0xff]
    %v123 = vld [vmem:[#allocation7 + $0x158] sm:$0xff]
    %v124 = vld [vmem:[#allocation7 + $0x160] sm:$0xff]
    %v125 = vld [vmem:[#allocation7 + $0x168] sm:$0xff]
    %v126 = vld [vmem:[#allocation7 + $0x170] sm:$0xff]
    %v127 = vld [vmem:[#allocation7 + $0x178] sm:$0xff]
    %v128 = vld [vmem:[#allocation8] sm:$0xff]
    %v129 = vld [vmem:[#allocation8 + $0x8] sm:$0xff]
    %v130 = vld [vmem:[#allocation8 + $0x10] sm:$0xff]
    %v131 = vld [vmem:[#allocation8 + $0x18] sm:$0xff]
    %v132 = vld [vmem:[#allocation8 + $0x20] sm:$0xff]
    %v133 = vld [vmem:[#allocation8 + $0x28] sm:$0xff]
    %v134 = vld [vmem:[#allocation8 + $0x30] sm:$0xff]
    %v135 = vld [vmem:[#allocation8 + $0x38] sm:$0xff]
    %v136 = vld [vmem:[#allocation8 + $0x40] sm:$0xff]
    %v137 = vld [vmem:[#allocation8 + $0x48] sm:$0xff]
    %v138 = vld [vmem:[#allocation8 + $0x50] sm:$0xff]
    %v139 = vld [vmem:[#allocation8 + $0x58] sm:$0xff]
    %v140 = vld [vmem:[#allocation8 + $0x60] sm:$0xff]
    %v141 = vld [vmem:[#allocation8 + $0x68] sm:$0xff]
    %v142 = vld [vmem:[#allocation8 + $0x70] sm:$0xff]
    %v143 = vld [vmem:[#allocation8 + $0x78] sm:$0xff]
    %v144 = vld [vmem:[#allocation8 + $0x80] sm:$0xff]
    %v145 = vld [vmem:[#allocation8 + $0x88] sm:$0xff]
    %v146 = vld [vmem:[#allocation8 + $0x90] sm:$0xff]
    %v147 = vld [vmem:[#allocation8 + $0x98] sm:$0xff]
    %v148 = vld [vmem:[#allocation8 + $0xa0] sm:$0xff]
    %v149 = vld [vmem:[#allocation8 + $0xa8] sm:$0xff]
    %v150 = vld [vmem:[#allocation8 + $0xb0] sm:$0xff]
    %v151 = vld [vmem:[#allocation8 + $0xb8] sm:$0xff]
    %v152 = vld [vmem:[#allocation8 + $0xc0] sm:$0xff]
    %v153 = vld [vmem:[#allocation8 + $0xc8] sm:$0xff]
    %v154 = vld [vmem:[#allocation8 + $0xd0] sm:$0xff]
    %v155 = vld [vmem:[#allocation8 + $0xd8] sm:$0xff]
    %v156 = vld [vmem:[#allocation8 + $0xe0] sm:$0xff]
    %v157 = vld [vmem:[#allocation8 + $0xe8] sm:$0xff]
    %v158 = vld [vmem:[#allocation8 + $0xf0] sm:$0xff]
    %v159 = vld [vmem:[#allocation8 + $0xf8] sm:$0xff]
    %v160 = vld [vmem:[#allocation8 + $0x100] sm:$0xff]
    %v161 = vld [vmem:[#allocation8 + $0x108] sm:$0xff]
    %v162 = vld [vmem:[#allocation8 + $0x110] sm:$0xff]
    %v163 = vld [vmem:[#allocation8 + $0x118] sm:$0xff]
    %v164 = vld [vmem:[#allocation8 + $0x120] sm:$0xff]
    %v165 = vld [vmem:[#allocation8 + $0x128] sm:$0xff]
    %v166 = vld [vmem:[#allocation8 + $0x130] sm:$0xff]
    %v167 = vld [vmem:[#allocation8 + $0x138] sm:$0xff]
    %v168 = vld [vmem:[#allocation8 + $0x140] sm:$0xff]
    %v169 = vld [vmem:[#allocation8 + $0x148] sm:$0xff]
    %v170 = vld [vmem:[#allocation8 + $0x150] sm:$0xff]
    %v171 = vld [vmem:[#allocation8 + $0x158] sm:$0xff]
    %v172 = vld [vmem:[#allocation8 + $0x160] sm:$0xff]
    %v173 = vld [vmem:[#allocation8 + $0x168] sm:$0xff]
    %v174 = vld [vmem:[#allocation8 + $0x170] sm:$0xff]
    %v175 = vld [vmem:[#allocation8 + $0x178] sm:$0xff]
    %v176 = vld [vmem:[%s4] sm:$0x3f]
    %v178 = vlaneseq
    %v179 = vshrl.u32 %v178, 7
    %v180 = vsub.s32 0, %v179
    %v181 = vrot.slane %v176, %v180
    %v182 = vlaneseq
    %v183 = vshrl.u32 %v182, 7
    %v184 = vsub.s32 2, %v183
    %v185 = vrot.slane %v176, %v184
    %v186 = vlaneseq
    %v187 = vshrl.u32 %v186, 7
    %v188 = vsub.s32 4, %v187
    %v189 = vrot.slane %v176, %v188
    %v193 = vlaneseq
    %v194 = vshrl.u32 %v193, 7
    %v195 = vsub.s32 0, %v194
    %v196 = vrot.slane %v181, %v195
    %v197 = vlaneseq
    %v198 = vshrl.u32 %v197, 7
    %v199 = vsub.s32 0, %v198
    %v200 = vrot.slane %v185, %v199
    %v201 = vlaneseq
    %v202 = vshrl.u32 %v201, 7
    %v203 = vsub.s32 0, %v202
    %v204 = vrot.slane %v189, %v203
    %205 = vmatprep.subr.mxu0 %v81
    %206 = vmatpush1.msra.mxu0 %v80
    %207 = vmatprep.subr.mxu0 %v84
    %208 = vmatpush1.msra.mxu0 %v83
    %209 = vmatprep.subr.mxu0 %v87
    %210 = vmatpush1.msra.mxu0 %v86
    %211 = vmatprep.subr.mxu0 %v90
    %212 = vmatpush1.msra.mxu0 %v89
    %213 = vmatprep.subr.mxu0 %v93
    %214 = vmatpush1.msra.mxu0 %v92
    %215 = vmatprep.subr.mxu0 %v96
    %216 = vmatpush1.msra.mxu0 %v95
    %217 = vmatprep.subr.mxu0 %v99
    %218 = vmatpush1.msra.mxu0 %v98
    %219 = vmatprep.subr.mxu0 %v102
    %220 = vmatpush1.msra.mxu0 %v101
    %221 = vmatprep.subr.mxu0 %v105
    %222 = vmatpush1.msra.mxu0 %v104
    %223 = vmatprep.subr.mxu0 %v108
    %224 = vmatpush1.msra.mxu0 %v107
    %225 = vmatprep.subr.mxu0 %v111
    %226 = vmatpush1.msra.mxu0 %v110
    %227 = vmatprep.subr.mxu0 %v114
    %228 = vmatpush1.msra.mxu0 %v113
    %229 = vmatprep.subr.mxu0 %v117
    %230 = vmatpush1.msra.mxu0 %v116
    %231 = vmatprep.subr.mxu0 %v120
    %232 = vmatpush1.msra.mxu0 %v119
    %233 = vmatprep.subr.mxu0 %v123
    %234 = vmatpush1.msra.mxu0 %v122
    %235 = vmatprep.subr.mxu0 %v126
    %236 = vmatpush1.msra.mxu0 %v125
    %237 = vmatprep.subr.mxu0 0.0
    %238 = vmatpush1.msra.mxu0 0.0
    %239 = vmatprep.subr.mxu0 0.0
    %240 = vmatpush1.msra.mxu0 0.0
    %241 = vmatprep.subr.mxu0 0.0
    %242 = vmatpush1.msra.mxu0 0.0
    %243 = vmatprep.subr.mxu0 0.0
    %244 = vmatpush1.msra.mxu0 0.0
    %245 = vmatprep.subr.mxu0 0.0
    %246 = vmatpush1.msra.mxu0 0.0
    %247 = vmatprep.subr.mxu0 0.0
    %248 = vmatpush1.msra.mxu0 0.0
    %249 = vmatprep.subr.mxu0 0.0
    %250 = vmatpush1.msra.mxu0 0.0
    %251 = vmatprep.subr.mxu0 0.0
    %252 = vmatpush1.msra.mxu0 0.0
    %253 = vmatprep.subr.mxu0 0.0
    %254 = vmatpush1.msra.mxu0 0.0
    %255 = vmatprep.subr.mxu0 0.0
    %256 = vmatpush1.msra.mxu0 0.0
    %257 = vmatprep.subr.mxu0 0.0
    %258 = vmatpush1.msra.mxu0 0.0
    %259 = vmatprep.subr.mxu0 0.0
    %260 = vmatpush1.msra.mxu0 0.0
    %261 = vmatprep.subr.mxu0 0.0
    %262 = vmatpush1.msra.mxu0 0.0
    %263 = vmatprep.subr.mxu0 0.0
    %264 = vmatpush1.msra.mxu0 0.0
    %265 = vmatprep.subr.mxu0 0.0
    %266 = vmatpush1.msra.mxu0 0.0
    %267 = vmatprep.subr.mxu0 0.0
    %268 = vmatpush1.msra.mxu0 0.0
    %269 = vmatprep.mubr.f32.mxu0 0.0
    %270 = vmatmul.mubr.f32.gmra.mrb[0].mxu0 %v76
    %v271 = vpop.f32.mrb[0].mxu0
    %v272 = vadd.f32 %v196, %v271
    %v273 = vpop.f32.mrb[0].mxu0
    %v274 = vadd.f32 %v200, %v273
    %275 = vmatprep.mubr.f32.mxu0 0.0
    %276 = vmatmul.mubr.f32.gmra.mrb[0].mxu0 %v77
    %v277 = vpop.f32.mrb[0].mxu0
    %v278 = vadd.f32 %v196, %v277
    %v279 = vpop.f32.mrb[0].mxu0
    %v280 = vadd.f32 %v200, %v279
    %281 = vdwg.mxu0
    %282 = vmatprep.subr.mxu0 0.0
    %283 = vmatpush1.msra.mxu0 %v82
    %284 = vmatprep.subr.mxu0 0.0
    %285 = vmatpush1.msra.mxu0 %v85
    %286 = vmatprep.subr.mxu0 0.0
    %287 = vmatpush1.msra.mxu0 %v88
    %288 = vmatprep.subr.mxu0 0.0
    %289 = vmatpush1.msra.mxu0 %v91
    %290 = vmatprep.subr.mxu0 0.0
    %291 = vmatpush1.msra.mxu0 %v94
    %292 = vmatprep.subr.mxu0 0.0
    %293 = vmatpush1.msra.mxu0 %v97
    %294 = vmatprep.subr.mxu0 0.0
    %295 = vmatpush1.msra.mxu0 %v100
    %296 = vmatprep.subr.mxu0 0.0
    %297 = vmatpush1.msra.mxu0 %v103
    %298 = vmatprep.subr.mxu0 0.0
    %299 = vmatpush1.msra.mxu0 %v106
    %300 = vmatprep.subr.mxu0 0.0
    %301 = vmatpush1.msra.mxu0 %v109
    %302 = vmatprep.subr.mxu0 0.0
    %303 = vmatpush1.msra.mxu0 %v112
    %304 = vmatprep.subr.mxu0 0.0
    %305 = vmatpush1.msra.mxu0 %v115
    %306 = vmatprep.subr.mxu0 0.0
    %307 = vmatpush1.msra.mxu0 %v118
    %308 = vmatprep.subr.mxu0 0.0
    %309 = vmatpush1.msra.mxu0 %v121
    %310 = vmatprep.subr.mxu0 0.0
    %311 = vmatpush1.msra.mxu0 %v124
    %312 = vmatprep.subr.mxu0 0.0
    %313 = vmatpush1.msra.mxu0 %v127
    %314 = vmatprep.subr.mxu0 0.0
    %315 = vmatpush1.msra.mxu0 0.0
    %316 = vmatprep.subr.mxu0 0.0
    %317 = vmatpush1.msra.mxu0 0.0
    %318 = vmatprep.subr.mxu0 0.0
    %319 = vmatpush1.msra.mxu0 0.0
    %320 = vmatprep.subr.mxu0 0.0
    %321 = vmatpush1.msra.mxu0 0.0
    %322 = vmatprep.subr.mxu0 0.0
    %323 = vmatpush1.msra.mxu0 0.0
    %324 = vmatprep.subr.mxu0 0.0
    %325 = vmatpush1.msra.mxu0 0.0
    %326 = vmatprep.subr.mxu0 0.0
    %327 = vmatpush1.msra.mxu0 0.0
    %328 = vmatprep.subr.mxu0 0.0
    %329 = vmatpush1.msra.mxu0 0.0
    %330 = vmatprep.subr.mxu0 0.0
    %331 = vmatpush1.msra.mxu0 0.0
    %332 = vmatprep.subr.mxu0 0.0
    %333 = vmatpush1.msra.mxu0 0.0
    %334 = vmatprep.subr.mxu0 0.0
    %335 = vmatpush1.msra.mxu0 0.0
    %336 = vmatprep.subr.mxu0 0.0
    %337 = vmatpush1.msra.mxu0 0.0
    %338 = vmatprep.subr.mxu0 0.0
    %339 = vmatpush1.msra.mxu0 0.0
    %340 = vmatprep.subr.mxu0 0.0
    %341 = vmatpush1.msra.mxu0 0.0
    %342 = vmatprep.subr.mxu0 0.0
    %343 = vmatpush1.msra.mxu0 0.0
    %344 = vmatprep.subr.mxu0 0.0
    %345 = vmatpush1.msra.mxu0 0.0
    %346 = vmatprep.mubr.f32.mxu0 0.0
    %347 = vmatmul.mubr.f32.gmra.mrb[0].mxu0 %v76
    %v348 = vpop.f32.mrb[0].mxu0
    %v349 = vadd.f32 %v204, %v348
    %v350 = vpop.f32.mrb[0].mxu0
    %351 = vmatprep.mubr.f32.mxu0 0.0
    %352 = vmatmul.mubr.f32.gmra.mrb[0].mxu0 %v77
    %v353 = vpop.f32.mrb[0].mxu0
    %v354 = vadd.f32 %v204, %v353
    %v355 = vpop.f32.mrb[0].mxu0
    %356 = vdwg.mxu0
    %v357 = vlaneseq
    %v358 = vshrl.u32 %v357, 7
    %v359 = vsub.s32 1, %v358
    %v360 = vrot.slane %v176, %v359
    %v361 = vlaneseq
    %v362 = vshrl.u32 %v361, 7
    %v363 = vsub.s32 3, %v362
    %v364 = vrot.slane %v176, %v363
    %v365 = vlaneseq
    %v366 = vshrl.u32 %v365, 7
    %v367 = vsub.s32 5, %v366
    %v368 = vrot.slane %v176, %v367
    %v372 = vlaneseq
    %v373 = vshrl.u32 %v372, 7
    %v374 = vsub.s32 1, %v373
    %v375 = vrot.slane %v360, %v374
    %v376 = vlaneseq
    %v377 = vshrl.u32 %v376, 7
    %v378 = vsub.s32 1, %v377
    %v379 = vrot.slane %v364, %v378
    %v380 = vlaneseq
    %v381 = vshrl.u32 %v380, 7
    %v382 = vsub.s32 1, %v381
    %v383 = vrot.slane %v368, %v382
    %384 = vmatprep.subr.mxu0 %v129
    %385 = vmatpush1.msra.mxu0 %v128
    %386 = vmatprep.subr.mxu0 %v132
    %387 = vmatpush1.msra.mxu0 %v131
    %388 = vmatprep.subr.mxu0 %v135
    %389 = vmatpush1.msra.mxu0 %v134
    %390 = vmatprep.subr.mxu0 %v138
    %391 = vmatpush1.msra.mxu0 %v137
    %392 = vmatprep.subr.mxu0 %v141
    %393 = vmatpush1.msra.mxu0 %v140
    %394 = vmatprep.subr.mxu0 %v144
    %395 = vmatpush1.msra.mxu0 %v143
    %396 = vmatprep.subr.mxu0 %v147
    %397 = vmatpush1.msra.mxu0 %v146
    %398 = vmatprep.subr.mxu0 %v150
    %399 = vmatpush1.msra.mxu0 %v149
    %400 = vmatprep.subr.mxu0 %v153
    %401 = vmatpush1.msra.mxu0 %v152
    %402 = vmatprep.subr.mxu0 %v156
    %403 = vmatpush1.msra.mxu0 %v155
    %404 = vmatprep.subr.mxu0 %v159
    %405 = vmatpush1.msra.mxu0 %v158
    %406 = vmatprep.subr.mxu0 %v162
    %407 = vmatpush1.msra.mxu0 %v161
    %408 = vmatprep.subr.mxu0 %v165
    %409 = vmatpush1.msra.mxu0 %v164
    %410 = vmatprep.subr.mxu0 %v168
    %411 = vmatpush1.msra.mxu0 %v167
    %412 = vmatprep.subr.mxu0 %v171
    %413 = vmatpush1.msra.mxu0 %v170
    %414 = vmatprep.subr.mxu0 %v174
    %415 = vmatpush1.msra.mxu0 %v173
    %416 = vmatprep.subr.mxu0 0.0
    %417 = vmatpush1.msra.mxu0 0.0
    %418 = vmatprep.subr.mxu0 0.0
    %419 = vmatpush1.msra.mxu0 0.0
    %420 = vmatprep.subr.mxu0 0.0
    %421 = vmatpush1.msra.mxu0 0.0
    %422 = vmatprep.subr.mxu0 0.0
    %423 = vmatpush1.msra.mxu0 0.0
    %424 = vmatprep.subr.mxu0 0.0
    %425 = vmatpush1.msra.mxu0 0.0
    %426 = vmatprep.subr.mxu0 0.0
    %427 = vmatpush1.msra.mxu0 0.0
    %428 = vmatprep.subr.mxu0 0.0
    %429 = vmatpush1.msra.mxu0 0.0
    %430 = vmatprep.subr.mxu0 0.0
    %431 = vmatpush1.msra.mxu0 0.0
    %432 = vmatprep.subr.mxu0 0.0
    %433 = vmatpush1.msra.mxu0 0.0
    %434 = vmatprep.subr.mxu0 0.0
    %435 = vmatpush1.msra.mxu0 0.0
    %436 = vmatprep.subr.mxu0 0.0
    %437 = vmatpush1.msra.mxu0 0.0
    %438 = vmatprep.subr.mxu0 0.0
    %439 = vmatpush1.msra.mxu0 0.0
    %440 = vmatprep.subr.mxu0 0.0
    %441 = vmatpush1.msra.mxu0 0.0
    %442 = vmatprep.subr.mxu0 0.0
    %443 = vmatpush1.msra.mxu0 0.0
    %444 = vmatprep.subr.mxu0 0.0
    %445 = vmatpush1.msra.mxu0 0.0
    %446 = vmatprep.subr.mxu0 0.0
    %447 = vmatpush1.msra.mxu0 0.0
    %448 = vmatprep.mubr.f32.mxu0 0.0
    %449 = vmatmul.mubr.f32.gmra.mrb[0].mxu0 %v78
    %v450 = vpop.f32.mrb[0].mxu0
    %v451 = vadd.f32 %v375, %v450
    %v452 = vpop.f32.mrb[0].mxu0
    %v453 = vadd.f32 %v379, %v452
    %454 = vmatprep.mubr.f32.mxu0 0.0
    %455 = vmatmul.mubr.f32.gmra.mrb[0].mxu0 %v79
    %v456 = vpop.f32.mrb[0].mxu0
    %v457 = vadd.f32 %v375, %v456
    %v458 = vpop.f32.mrb[0].mxu0
    %v459 = vadd.f32 %v379, %v458
    %460 = vdwg.mxu0
    %461 = vmatprep.subr.mxu0 0.0
    %462 = vmatpush1.msra.mxu0 %v130
    %463 = vmatprep.subr.mxu0 0.0
    %464 = vmatpush1.msra.mxu0 %v133
    %465 = vmatprep.subr.mxu0 0.0
    %466 = vmatpush1.msra.mxu0 %v136
    %467 = vmatprep.subr.mxu0 0.0
    %468 = vmatpush1.msra.mxu0 %v139
    %469 = vmatprep.subr.mxu0 0.0
    %470 = vmatpush1.msra.mxu0 %v142
    %471 = vmatprep.subr.mxu0 0.0
    %472 = vmatpush1.msra.mxu0 %v145
    %473 = vmatprep.subr.mxu0 0.0
    %474 = vmatpush1.msra.mxu0 %v148
    %475 = vmatprep.subr.mxu0 0.0
    %476 = vmatpush1.msra.mxu0 %v151
    %477 = vmatprep.subr.mxu0 0.0
    %478 = vmatpush1.msra.mxu0 %v154
    %479 = vmatprep.subr.mxu0 0.0
    %480 = vmatpush1.msra.mxu0 %v157
    %481 = vmatprep.subr.mxu0 0.0
    %482 = vmatpush1.msra.mxu0 %v160
    %483 = vmatprep.subr.mxu0 0.0
    %484 = vmatpush1.msra.mxu0 %v163
    %485 = vmatprep.subr.mxu0 0.0
    %486 = vmatpush1.msra.mxu0 %v166
    %487 = vmatprep.subr.mxu0 0.0
    %488 = vmatpush1.msra.mxu0 %v169
    %489 = vmatprep.subr.mxu0 0.0
    %490 = vmatpush1.msra.mxu0 %v172
    %491 = vmatprep.subr.mxu0 0.0
    %492 = vmatpush1.msra.mxu0 %v175
    %493 = vmatprep.subr.mxu0 0.0
    %494 = vmatpush1.msra.mxu0 0.0
    %495 = vmatprep.subr.mxu0 0.0
    %496 = vmatpush1.msra.mxu0 0.0
    %497 = vmatprep.subr.mxu0 0.0
    %498 = vmatpush1.msra.mxu0 0.0
    %499 = vmatprep.subr.mxu0 0.0
    %500 = vmatpush1.msra.mxu0 0.0
    %501 = vmatprep.subr.mxu0 0.0
    %502 = vmatpush1.msra.mxu0 0.0
    %503 = vmatprep.subr.mxu0 0.0
    %504 = vmatpush1.msra.mxu0 0.0
    %505 = vmatprep.subr.mxu0 0.0
    %506 = vmatpush1.msra.mxu0 0.0
    %507 = vmatprep.subr.mxu0 0.0
    %508 = vmatpush1.msra.mxu0 0.0
    %509 = vmatprep.subr.mxu0 0.0
    %510 = vmatpush1.msra.mxu0 0.0
    %511 = vmatprep.subr.mxu0 0.0
    %512 = vmatpush1.msra.mxu0 0.0
    %513 = vmatprep.subr.mxu0 0.0
    %514 = vmatpush1.msra.mxu0 0.0
    %515 = vmatprep.subr.mxu0 0.0
    %516 = vmatpush1.msra.mxu0 0.0
    %517 = vmatprep.subr.mxu0 0.0
    %518 = vmatpush1.msra.mxu0 0.0
    %519 = vmatprep.subr.mxu0 0.0
    %520 = vmatpush1.msra.mxu0 0.0
    %521 = vmatprep.subr.mxu0 0.0
    %522 = vmatpush1.msra.mxu0 0.0
    %523 = vmatprep.subr.mxu0 0.0
    %524 = vmatpush1.msra.mxu0 0.0
    %525 = vmatprep.mubr.f32.mxu0 0.0
    %526 = vmatmul.mubr.f32.gmra.mrb[0].mxu0 %v78
    %v527 = vpop.f32.mrb[0].mxu0
    %v528 = vadd.f32 %v383, %v527
    %v529 = vpop.f32.mrb[0].mxu0
    %530 = vmatprep.mubr.f32.mxu0 0.0
    %531 = vmatmul.mubr.f32.gmra.mrb[0].mxu0 %v79
    %v532 = vpop.f32.mrb[0].mxu0
    %v533 = vadd.f32 %v383, %v532
    %v534 = vpop.f32.mrb[0].mxu0
    %535 = vdwg.mxu0
    %v536 = vadd.f32 %v272, %v451
    %v537 = vadd.f32 %v278, %v457
    %v538 = vxor.u32 %v536, 2147483648
    %v539 = vxor.u32 %v537, 2147483648
    %v540 = vmul.f32 %v538, 1.442695
    %v541 = vpow.pop %v540
    %v542 = vmul.f32 %v539, 1.442695
    %v543 = vpow.pop %v542
    %v544 = vadd.f32 %v541, 1.0
    %v545 = vadd.f32 %v543, 1.0
    %v546 = vrcp.pop %v544
    %v547 = vmul.f32 1.0, %v546
    %v548 = vrcp.pop %v545
    %v549 = vmul.f32 1.0, %v548
    %v550 = vadd.f32 %v274, %v453
    %v551 = vadd.f32 %v280, %v459
    %v552 = vxor.u32 %v550, 2147483648
    %v553 = vxor.u32 %v551, 2147483648
    %v554 = vmul.f32 %v552, 1.442695
    %v555 = vpow.pop %v554
    %v556 = vmul.f32 %v553, 1.442695
    %v557 = vpow.pop %v556
    %v558 = vadd.f32 %v555, 1.0
    %v559 = vadd.f32 %v557, 1.0
    %v560 = vrcp.pop %v558
    %v561 = vmul.f32 1.0, %v560
    %v562 = vrcp.pop %v559
    %v563 = vmul.f32 1.0, %v562
    %v564 = vmul.f32 %v547, %v528
    %v565 = vmul.f32 %v549, %v533
    %v566 = vadd.f32 %v349, %v564
    %v567 = vadd.f32 %v354, %v565
    %v568 = vtanh.pop %v566
    %v569 = vtanh.pop %v567
    %v570 = vsub.f32 1.0, %v561
    %v571 = vsub.f32 1.0, %v563
    %v572 = vmul.f32 %v570, %v568
    %v573 = vmul.f32 %v571, %v569
    %v574 = vmul.f32 %v561, %v78
    %v575 = vmul.f32 %v563, %v79
    %v576 = vadd.f32 %v572, %v574
    %v577 = vadd.f32 %v573, %v575
    %578 = vst [vmem:[#allocation10] sm:$0xff] %v576
    %579 = vst [vmem:[#allocation10 + $0x8] sm:$0xff] %v577
    // Predicated region
    $region38: #{tpu_custom_call.1} parent=1 // pred_check
      _
    $region39: #{tpu_custom_call.1} parent=1 // pred_check_branch
      %581 = sbr.rel (0) target = $region41
    $region40: #{tpu_custom_call.1} parent=1 // pred_region
      %s583 = ssub.s32 256, 256
      %584 = vsyncadd [#allocation4], %s583
      %s585 = sshll.u32 [#allocation10], 4
      %s586 = int_to_ptr.vmem [resolvable:$true] %s585
      %591 = dma.vmem_to_hbm [thread:$0]  %s586, 256, %s5, [#allocation4], 128, 128, 8
    $region41: #{tpu_custom_call.1} parent=1 // pred_fallthru
      _
    // Predicated region
    $region42: #{tpu_custom_call.1} parent=1 // pred_check
      _
    $region43: #{tpu_custom_call.1} parent=1 // pred_check_branch
      %593 = sbr.rel (0) target = $region45
    $region44: #{tpu_custom_call.1} parent=1 // pred_region
      %594 = dma.done [#allocation4], 256
    $region45: #{tpu_custom_call.1} parent=1 // pred_fallthru
      _
    %595 = vsyncpa [#allocation3], 1
    %596 = vsyncpa [#allocation6], 1
    %597 = vsyncpa [#allocation9], 1
    %598 = vsyncpa [#allocation4], 1

</llo_original>
